<compile_context>
chip_gen: v5e
topology: v5e:2x2
jax: 0.10.0
libtpu: 0.0.40
codegen_flags: <defaults>
</compile_context>

<pallas_src>
from functools import partial

import jax
import jax.numpy as jnp
from jax.experimental import pallas as pl
from jax.experimental.pallas import tpu as pltpu

_LANE = 128
_TILE_P = 256            # prototype-column tile (256 = MXU width on v6e/v7x)


def _vmem_limit_bytes():
    """Scoped-VMEM budget with headroom under the chip's physical per-core
    VMEM (64 MiB on v7x, 128 MiB on v5e/v6e); falls back to a safe 32 MiB."""
    try:
        cap = pltpu.get_tpu_info().vmem_capacity_bytes
        return int(min(96 * 1024 * 1024, cap - 16 * 1024 * 1024))
    except Exception:
        return 32 * 1024 * 1024


def _multihead_kernel(x_ref, w1_ref, sp_ref, w2_ref, wp_ref,
                      logits_ref, z_ref, *,
                      num_heads, hidden_dim, d_pad, matmul_dtype):
    """One prototype-column tile per grid step (all heads fused):
       Linear1 (wide 2-D matmul, bias dropped) -> BN(train stats) -> ReLU ->
       per-head Linear2 -> L2-norm -> prototype tile.
       The (small) projector is recomputed per P-tile; weights and feats stay
       resident because their index_maps are constant along the grid."""
    B = x_ref.shape[0]
    hh_w = num_heads * hidden_dim

    # ---- Linear 1: all heads as ONE wide 2-D MXU matmul ---------------------
    x = x_ref[...].astype(matmul_dtype)                          # (B, Din)
    hh = jnp.dot(x, w1_ref[...],
                 preferred_element_type=jnp.float32)             # (B, H*Hid) f32

    # ---- BatchNorm1d (training-mode batch stats), one traversal -------------
    # b1 is dropped: exactly cancelled by the batch-mean subtraction.
    gamma = sp_ref[0:1, :hh_w]                                   # (1, H*Hid)
    beta = sp_ref[1:2, :hh_w]
    inv_b = 1.0 / B
    s1 = jnp.sum(hh, axis=0, keepdims=True)
    s2 = jnp.sum(hh * hh, axis=0, keepdims=True)
    mean = s1 * inv_b
    var = s2 * inv_b - mean * mean                               # E[x^2]-E[x]^2
    scale = gamma * jax.lax.rsqrt(var + 1e-5)
    shift = beta - mean * scale
    act = jnp.maximum(hh * scale + shift, 0.0)                   # fused BN+ReLU
    act = act.astype(matmul_dtype)

    # ---- Per head: Linear2 -> L2-normalize -> prototype P-tile --------------
    # Static unroll (H small); plain 2-D dots, no batched-einsum relayouts.
    for h in range(num_heads):
        a_h = act[:, h * hidden_dim:(h + 1) * hidden_dim]        # (B, Hid)
        b2_h = sp_ref[2:3, h * d_pad:(h + 1) * d_pad]            # (1, Dpad)
        z_h = jnp.dot(a_h, w2_ref[h],
                      preferred_element_type=jnp.float32) + b2_h  # (B, Dpad) f32
        ssq = jnp.sum(z_h * z_h, axis=-1, keepdims=True)
        z_h = z_h * jax.lax.rsqrt(jnp.maximum(ssq, 1e-24))       # z/max(||z||,1e-12)
        logit_h = jnp.dot(z_h.astype(matmul_dtype), wp_ref[h],
                          preferred_element_type=jnp.float32)    # (B, tile_p)
        logits_ref[h] = logit_h.astype(logits_ref.dtype)
        z_ref[h] = z_h                                           # same value each tile


def pack_params(params, *, matmul_dtype=jnp.bfloat16,
                logits_dtype=jnp.bfloat16, tile_p=_TILE_P):
    """One-time (per parameter update) re-layout: transpose / lane-pad / cast
    weights and pack the tiny per-head vectors (gamma, beta, b2) into one
    array.  Keeps these HBM-heavy XLA ops out of the per-call forward."""
    H, Hid, Din = params["w1"].shape
    Dout = params["w2"].shape[1]
    P = params["wp"].shape[1]

    Dpad = pl.cdiv(Dout, _LANE) * _LANE
    tp = tile_p if P > tile_p else pl.cdiv(P, _LANE) * _LANE
    Ppad = pl.cdiv(P, tp) * tp
    HHid = H * Hid
    W = max(HHid, H * Dpad)

    # Linear1 weights for all heads as one (Din, H*Hid) matrix.
    w1_2d = jnp.transpose(params["w1"], (2, 0, 1)).reshape(Din, HHid)
    w1_2d = w1_2d.astype(matmul_dtype)

    # Linear2 / prototype weights, pre-transposed and zero-padded to lane
    # multiples so every in-kernel store is unmasked & lane-dense.
    w2t = jnp.pad(jnp.swapaxes(params["w2"], 1, 2),
                  ((0, 0), (0, 0), (0, Dpad - Dout))).astype(matmul_dtype)
    wpt = jnp.pad(jnp.swapaxes(params["wp"], 1, 2),
                  ((0, 0), (0, Dpad - Dout), (0, Ppad - P))).astype(matmul_dtype)

    # gamma / beta / b2 packed into one small f32 array -> single DMA.
    b2_flat = jnp.zeros((H, Dpad), jnp.float32).at[:, :Dout].set(params["b2"])
    sp = jnp.zeros((3, W), jnp.float32)
    sp = sp.at[0, :HHid].set(params["gamma"].reshape(-1))
    sp = sp.at[1, :HHid].set(params["beta"].reshape(-1))
    sp = sp.at[2, :H * Dpad].set(b2_flat.reshape(-1))

    return dict(w1=w1_2d, sp=sp, w2=w2t, wp=wpt,
                num_heads=H, hidden_dim=Hid, input_dim=Din,
                output_dim=Dout, d_pad=Dpad,
                num_prototypes=P, p_pad=Ppad, tile_p=tp,
                matmul_dtype=matmul_dtype, logits_dtype=logits_dtype)


def multihead_forward(feats, packed):
    """feats: (B, Din) f32.  Returns lane-dense padded outputs
       logits (H, B, Ppad) in packed['logits_dtype'] and z (H, B, Dpad) f32;
       padded columns are exact zeros (consumer may mask instead of slicing)."""
    B, Din = feats.shape
    H, Hid = packed["num_heads"], packed["hidden_dim"]
    Dpad, Ppad, tp = packed["d_pad"], packed["p_pad"], packed["tile_p"]
    HHid = H * Hid
    W = packed["sp"].shape[1]
    n_p_tiles = Ppad // tp

    grid_spec = pltpu.PrefetchScalarGridSpec(
        num_scalar_prefetch=0,
        grid=(n_p_tiles,),
        in_specs=[
            # Constant index_maps along the parallel P axis -> blocks stay
            # resident in VMEM (single DMA), only wp streams per tile.
            pl.BlockSpec((B, Din), lambda p: (0, 0)),            # feats
            pl.BlockSpec((Din, HHid), lambda p: (0, 0)),         # w1 (2-D)
            pl.BlockSpec((3, W), lambda p: (0, 0)),              # gamma/beta/b2
            pl.BlockSpec((H, Hid, Dpad), lambda p: (0, 0, 0)),   # w2^T (padded)
            pl.BlockSpec((H, Dpad, tp), lambda p: (0, 0, p)),    # wp^T P-tile
        ],
        out_specs=[
            pl.BlockSpec((H, B, tp), lambda p: (0, 0, p)),       # logits tile
            pl.BlockSpec((H, B, Dpad), lambda p: (0, 0, 0)),     # z (same value/tile)
        ],
    )

    return pl.pallas_call(
        partial(_multihead_kernel,
                num_heads=H, hidden_dim=Hid, d_pad=Dpad,
                matmul_dtype=packed["matmul_dtype"]),
        out_shape=(
            jax.ShapeDtypeStruct((H, B, Ppad), packed["logits_dtype"]),
            jax.ShapeDtypeStruct((H, B, Dpad), jnp.float32),
        ),
        grid_spec=grid_spec,
        compiler_params=pltpu.CompilerParams(
            dimension_semantics=("parallel",),        # shards P-tiles over v7x's 2 TCs
            vmem_limit_bytes=_vmem_limit_bytes()),
    )(feats, packed["w1"], packed["sp"], packed["w2"], packed["wp"])


def init_params(key, num_heads, input_dim, hidden_dim, output_dim,
                num_prototypes):
    """PyTorch-style uniform +-1/sqrt(fan_in) init; prototype rows are
    L2-normalized, matching normalize_prototypes() called in __init__."""
    ks = jax.random.split(key, 5)
    lim1 = 1.0 / jnp.sqrt(input_dim)
    lim2 = 1.0 / jnp.sqrt(hidden_dim)
    w1 = jax.random.uniform(ks[0], (num_heads, hidden_dim, input_dim),
                            jnp.float32, -lim1, lim1)
    b1 = jax.random.uniform(ks[1], (num_heads, hidden_dim),
                            jnp.float32, -lim1, lim1)
    gamma = jnp.ones((num_heads, hidden_dim), jnp.float32)    # BN weight
    beta = jnp.zeros((num_heads, hidden_dim), jnp.float32)    # BN bias
    w2 = jax.random.uniform(ks[2], (num_heads, output_dim, hidden_dim),
                            jnp.float32, -lim2, lim2)
    b2 = jax.random.uniform(ks[3], (num_heads, output_dim),
                            jnp.float32, -lim2, lim2)
    wp = jax.random.uniform(ks[4], (num_heads, num_prototypes, output_dim),
                            jnp.float32, -1.0, 1.0)
    wp = wp / jnp.maximum(jnp.linalg.norm(wp, axis=-1, keepdims=True), 1e-12)
    return dict(w1=w1, b1=b1, gamma=gamma, beta=beta, w2=w2, b2=b2, wp=wp)


def _reference_forward(feats, params):
    """Pure-JAX f32 reference mirroring the PyTorch forward exactly
    (including the b1 bias that the kernel drops under train-mode BN)."""
    hp = jax.lax.Precision.HIGHEST
    logits_all, z_all = [], []
    for h in range(params["w1"].shape[0]):
        x = jnp.matmul(feats, params["w1"][h].T, precision=hp) + params["b1"][h]
        mean = jnp.mean(x, axis=0, keepdims=True)
        var = jnp.mean((x - mean) ** 2, axis=0, keepdims=True)
        x = (x - mean) / jnp.sqrt(var + 1e-5)
        x = x * params["gamma"][h] + params["beta"][h]
        x = jnp.maximum(x, 0.0)
        z = jnp.matmul(x, params["w2"][h].T, precision=hp) + params["b2"][h]
        z = z / jnp.maximum(jnp.linalg.norm(z, axis=1, keepdims=True), 1e-12)
        logits_all.append(jnp.matmul(z, params["wp"][h].T, precision=hp))
        z_all.append(z)
    return jnp.stack(logits_all), jnp.stack(z_all)


if __name__ == "__main__":
    # Small shapes consistent with MultiHead.forward(feats: (B, input_dim)).
    # num_prototypes=300 -> Ppad=512, two 256-wide prototype tiles, so the
    # "parallel" grid axis is actually exercised.
    B, input_dim, hidden_dim, output_dim = 8, 32, 128, 16
    num_prototypes, num_heads = 300, 3

    key = jax.random.PRNGKey(0)
    k_feats, k_params = jax.random.split(key)
    feats = jax.random.normal(k_feats, (B, input_dim), jnp.float32)
    params = init_params(k_params, num_heads, input_dim, hidden_dim,
                         output_dim, num_prototypes)

    ref_logits, ref_z = _reference_forward(feats, params)

    # ---- Performance path: bf16 MXU operands + bf16 logits stores ----------
    packed = pack_params(params, matmul_dtype=jnp.bfloat16,
                         logits_dtype=jnp.bfloat16)
    logits_pad, z_pad = multihead_forward(feats, packed)
    logits_pad, z_pad = jax.block_until_ready((logits_pad, z_pad))

    assert logits_pad.shape == (num_heads, B, packed["p_pad"])
    assert z_pad.shape == (num_heads, B, packed["d_pad"])
    # Padded lanes are exact zeros (kernel never slices; consumers may mask).
    assert bool(jnp.all(logits_pad[:, :, num_prototypes:] == 0))
    assert bool(jnp.all(z_pad[:, :, output_dim:] == 0))

    # Validation-only slices to compare against the unpadded reference.
    logits = logits_pad[:, :, :num_prototypes].astype(jnp.float32)
    z = z_pad[:, :, :output_dim]
    assert jnp.allclose(logits, ref_logits, atol=5e-2, rtol=5e-2)
    assert jnp.allclose(z, ref_z, atol=5e-2, rtol=5e-2)

    # ---- Full-f32 path: tight check against the PyTorch-equivalent ref -----
    packed32 = pack_params(params, matmul_dtype=jnp.float32,
                           logits_dtype=jnp.float32)
    logits32_pad, z32_pad = multihead_forward(feats, packed32)
    logits32_pad, z32_pad = jax.block_until_ready((logits32_pad, z32_pad))
    assert jnp.allclose(logits32_pad[:, :, :num_prototypes], ref_logits,
                        atol=5e-3, rtol=5e-3)
    assert jnp.allclose(z32_pad[:, :, :output_dim], ref_z,
                        atol=5e-3, rtol=5e-3)

    print("KERNEL_OK")
</pallas_src>

<mosaic_0001>
module attributes {stable_mosaic.version = 11 : i64} {
  func.func @_multihead_kernel(%arg0: i32, %arg1: memref<8x32xf32, #tpu.memory_space<vmem>>, %arg2: memref<32x384xbf16, #tpu.memory_space<vmem>>, %arg3: memref<3x384xf32, #tpu.memory_space<vmem>>, %arg4: memref<3x128x128xbf16, #tpu.memory_space<vmem>>, %arg5: memref<3x128x256xbf16, #tpu.memory_space<vmem>>, %arg6: memref<3x8x256xbf16, #tpu.memory_space<vmem>>, %arg7: memref<3x8x128xf32, #tpu.memory_space<vmem>>) attributes {dimension_semantics = [#tpu.dimension_semantics<parallel>], iteration_bounds = array<i64: 2>, scalar_prefetch = 0 : i64, scratch_operands = 0 : i64, tpu.core_type = #tpu.core_type<tc>, window_params = [{pipeline_mode = #tpu.pipeline_mode<synchronous>, transform_indices = @transform_0, window_bounds = array<i64: 8, 32>}, {pipeline_mode = #tpu.pipeline_mode<synchronous>, transform_indices = @transform_1, window_bounds = array<i64: 32, 384>}, {pipeline_mode = #tpu.pipeline_mode<synchronous>, transform_indices = @transform_2, window_bounds = array<i64: 3, 384>}, {pipeline_mode = #tpu.pipeline_mode<synchronous>, transform_indices = @transform_3, window_bounds = array<i64: 3, 128, 128>}, {transform_indices = @transform_4, window_bounds = array<i64: 3, 128, 256>}, {transform_indices = @transform_5, window_bounds = array<i64: 3, 8, 256>}, {pipeline_mode = #tpu.pipeline_mode<synchronous>, transform_indices = @transform_6, window_bounds = array<i64: 3, 8, 128>}]} {
    %c0 = arith.constant 0 : index
    %c0_0 = arith.constant 0 : index
    %0 = vector.load %arg1[%c0, %c0_0] : memref<8x32xf32, #tpu.memory_space<vmem>>, vector<8x32xf32>
    %1 = arith.truncf %0 : vector<8x32xf32> to vector<8x32xbf16>
    %c0_1 = arith.constant 0 : index
    %c0_2 = arith.constant 0 : index
    %2 = vector.load %arg2[%c0_1, %c0_2] : memref<32x384xbf16, #tpu.memory_space<vmem>>, vector<32x384xbf16>
    %cst = arith.constant dense<0.000000e+00> : vector<8x384xf32>
    %3 = tpu.matmul %1, %2, %cst {dimension_numbers = #tpu.dot_dimension_numbers<[1], [0], [0], [1], [0, 0, 1, 1], [], []>} : vector<8x32xbf16>, vector<32x384xbf16>, vector<8x384xf32> -> vector<8x384xf32>
    %c0_3 = arith.constant 0 : index
    %c0_4 = arith.constant 0 : index
    %4 = vector.load %arg3[%c0_3, %c0_4] : memref<3x384xf32, #tpu.memory_space<vmem>>, vector<1x384xf32>
    %c1 = arith.constant 1 : index
    %c0_5 = arith.constant 0 : index
    %5 = vector.load %arg3[%c1, %c0_5] : memref<3x384xf32, #tpu.memory_space<vmem>>, vector<1x384xf32>
    %cst_6 = arith.constant dense<0.000000e+00> : vector<384xf32>
    %6 = vector.multi_reduction <add>, %3, %cst_6 [0] : vector<8x384xf32> to vector<384xf32>
    %7 = vector.shape_cast %6 : vector<384xf32> to vector<1x384xf32>
    %8 = arith.mulf %3, %3 : vector<8x384xf32>
    %cst_7 = arith.constant dense<0.000000e+00> : vector<384xf32>
    %9 = vector.multi_reduction <add>, %8, %cst_7 [0] : vector<8x384xf32> to vector<384xf32>
    %10 = vector.shape_cast %9 : vector<384xf32> to vector<1x384xf32>
    %cst_8 = arith.constant 1.250000e-01 : f32
    %11 = vector.broadcast %cst_8 : f32 to vector<1x384xf32>
    %12 = arith.mulf %7, %11 : vector<1x384xf32>
    %cst_9 = arith.constant 1.250000e-01 : f32
    %13 = vector.broadcast %cst_9 : f32 to vector<1x384xf32>
    %14 = arith.mulf %10, %13 : vector<1x384xf32>
    %15 = arith.mulf %12, %12 : vector<1x384xf32>
    %16 = arith.subf %14, %15 : vector<1x384xf32>
    %cst_10 = arith.constant 9.99999974E-6 : f32
    %17 = vector.broadcast %cst_10 : f32 to vector<1x384xf32>
    %18 = arith.addf %16, %17 : vector<1x384xf32>
    %19 = math.rsqrt %18 : vector<1x384xf32>
    %20 = arith.mulf %4, %19 : vector<1x384xf32>
    %21 = arith.mulf %12, %20 : vector<1x384xf32>
    %22 = arith.subf %5, %21 : vector<1x384xf32>
    %23 = vector.broadcast %20 : vector<1x384xf32> to vector<8x384xf32>
    %24 = arith.mulf %3, %23 : vector<8x384xf32>
    %25 = vector.broadcast %22 : vector<1x384xf32> to vector<8x384xf32>
    %26 = arith.addf %24, %25 : vector<8x384xf32>
    %cst_11 = arith.constant 0.000000e+00 : f32
    %27 = vector.broadcast %cst_11 : f32 to vector<8x384xf32>
    %28 = arith.maximumf %26, %27 : vector<8x384xf32>
    %29 = arith.truncf %28 : vector<8x384xf32> to vector<8x384xbf16>
    %30 = vector.extract_strided_slice %29 {offsets = [0, 0], sizes = [8, 128], strides = [1, 1]} : vector<8x384xbf16> to vector<8x128xbf16>
    %c2 = arith.constant 2 : index
    %c0_12 = arith.constant 0 : index
    %31 = vector.load %arg3[%c2, %c0_12] : memref<3x384xf32, #tpu.memory_space<vmem>>, vector<1x128xf32>
    %c0_13 = arith.constant 0 : index
    %c0_14 = arith.constant 0 : index
    %c0_15 = arith.constant 0 : index
    %32 = vector.load %arg4[%c0_13, %c0_14, %c0_15] : memref<3x128x128xbf16, #tpu.memory_space<vmem>>, vector<1x128x128xbf16>
    %33 = vector.shape_cast %32 : vector<1x128x128xbf16> to vector<128x128xbf16>
    %cst_16 = arith.constant dense<0.000000e+00> : vector<8x128xf32>
    %34 = tpu.matmul %30, %33, %cst_16 {dimension_numbers = #tpu.dot_dimension_numbers<[1], [0], [0], [1], [0, 0, 1, 1], [], []>} : vector<8x128xbf16>, vector<128x128xbf16>, vector<8x128xf32> -> vector<8x128xf32>
    %35 = vector.broadcast %31 : vector<1x128xf32> to vector<8x128xf32>
    %36 = arith.addf %34, %35 : vector<8x128xf32>
    %37 = arith.mulf %36, %36 : vector<8x128xf32>
    %cst_17 = arith.constant dense<0.000000e+00> : vector<8xf32>
    %38 = vector.multi_reduction <add>, %37, %cst_17 [1] : vector<8x128xf32> to vector<8xf32>
    %39 = vector.shape_cast %38 : vector<8xf32> to vector<8x1xf32>
    %cst_18 = arith.constant 1.000000e-24 : f32
    %40 = vector.broadcast %cst_18 : f32 to vector<8x1xf32>
    %41 = arith.maximumf %39, %40 : vector<8x1xf32>
    %42 = math.rsqrt %41 : vector<8x1xf32>
    %43 = vector.broadcast %42 : vector<8x1xf32> to vector<8x128xf32>
    %44 = arith.mulf %36, %43 : vector<8x128xf32>
    %45 = arith.truncf %44 : vector<8x128xf32> to vector<8x128xbf16>
    %c0_19 = arith.constant 0 : index
    %c0_20 = arith.constant 0 : index
    %c0_21 = arith.constant 0 : index
    %46 = vector.load %arg5[%c0_19, %c0_20, %c0_21] : memref<3x128x256xbf16, #tpu.memory_space<vmem>>, vector<1x128x256xbf16>
    %47 = vector.shape_cast %46 : vector<1x128x256xbf16> to vector<128x256xbf16>
    %cst_22 = arith.constant dense<0.000000e+00> : vector<8x256xf32>
    %48 = tpu.matmul %45, %47, %cst_22 {dimension_numbers = #tpu.dot_dimension_numbers<[1], [0], [0], [1], [0, 0, 1, 1], [], []>} : vector<8x128xbf16>, vector<128x256xbf16>, vector<8x256xf32> -> vector<8x256xf32>
    %49 = arith.truncf %48 : vector<8x256xf32> to vector<8x256xbf16>
    %c0_23 = arith.constant 0 : index
    %c0_24 = arith.constant 0 : index
    %c0_25 = arith.constant 0 : index
    %50 = vector.load %arg6[%c0_23, %c0_24, %c0_25] : memref<3x8x256xbf16, #tpu.memory_space<vmem>>, vector<1x8x256xbf16>
    %51 = vector.shape_cast %50 : vector<1x8x256xbf16> to vector<8x256xbf16>
    %52 = vector.shape_cast %49 : vector<8x256xbf16> to vector<1x8x256xbf16>
    tpu.vector_store %arg6[%c0_23, %c0_24, %c0_25], %52 {strides = array<i32>} : memref<3x8x256xbf16, #tpu.memory_space<vmem>>, vector<1x8x256xbf16>,
    %c0_26 = arith.constant 0 : index
    %c0_27 = arith.constant 0 : index
    %c0_28 = arith.constant 0 : index
    %53 = vector.load %arg7[%c0_26, %c0_27, %c0_28] : memref<3x8x128xf32, #tpu.memory_space<vmem>>, vector<1x8x128xf32>
    %54 = vector.shape_cast %53 : vector<1x8x128xf32> to vector<8x128xf32>
    %55 = vector.shape_cast %44 : vector<8x128xf32> to vector<1x8x128xf32>
    tpu.vector_store %arg7[%c0_26, %c0_27, %c0_28], %55 {strides = array<i32>} : memref<3x8x128xf32, #tpu.memory_space<vmem>>, vector<1x8x128xf32>,
    %56 = vector.extract_strided_slice %29 {offsets = [0, 128], sizes = [8, 128], strides = [1, 1]} : vector<8x384xbf16> to vector<8x128xbf16>
    %c2_29 = arith.constant 2 : index
    %c128 = arith.constant 128 : index
    %57 = vector.load %arg3[%c2_29, %c128] : memref<3x384xf32, #tpu.memory_space<vmem>>, vector<1x128xf32>
    %c1_30 = arith.constant 1 : index
    %c0_31 = arith.constant 0 : index
    %c0_32 = arith.constant 0 : index
    %58 = vector.load %arg4[%c1_30, %c0_31, %c0_32] : memref<3x128x128xbf16, #tpu.memory_space<vmem>>, vector<1x128x128xbf16>
    %59 = vector.shape_cast %58 : vector<1x128x128xbf16> to vector<128x128xbf16>
    %cst_33 = arith.constant dense<0.000000e+00> : vector<8x128xf32>
    %60 = tpu.matmul %56, %59, %cst_33 {dimension_numbers = #tpu.dot_dimension_numbers<[1], [0], [0], [1], [0, 0, 1, 1], [], []>} : vector<8x128xbf16>, vector<128x128xbf16>, vector<8x128xf32> -> vector<8x128xf32>
    %61 = vector.broadcast %57 : vector<1x128xf32> to vector<8x128xf32>
    %62 = arith.addf %60, %61 : vector<8x128xf32>
    %63 = arith.mulf %62, %62 : vector<8x128xf32>
    %cst_34 = arith.constant dense<0.000000e+00> : vector<8xf32>
    %64 = vector.multi_reduction <add>, %63, %cst_34 [1] : vector<8x128xf32> to vector<8xf32>
    %65 = vector.shape_cast %64 : vector<8xf32> to vector<8x1xf32>
    %cst_35 = arith.constant 1.000000e-24 : f32
    %66 = vector.broadcast %cst_35 : f32 to vector<8x1xf32>
    %67 = arith.maximumf %65, %66 : vector<8x1xf32>
    %68 = math.rsqrt %67 : vector<8x1xf32>
    %69 = vector.broadcast %68 : vector<8x1xf32> to vector<8x128xf32>
    %70 = arith.mulf %62, %69 : vector<8x128xf32>
    %71 = arith.truncf %70 : vector<8x128xf32> to vector<8x128xbf16>
    %c1_36 = arith.constant 1 : index
    %c0_37 = arith.constant 0 : index
    %c0_38 = arith.constant 0 : index
    %72 = vector.load %arg5[%c1_36, %c0_37, %c0_38] : memref<3x128x256xbf16, #tpu.memory_space<vmem>>, vector<1x128x256xbf16>
    %73 = vector.shape_cast %72 : vector<1x128x256xbf16> to vector<128x256xbf16>
    %cst_39 = arith.constant dense<0.000000e+00> : vector<8x256xf32>
    %74 = tpu.matmul %71, %73, %cst_39 {dimension_numbers = #tpu.dot_dimension_numbers<[1], [0], [0], [1], [0, 0, 1, 1], [], []>} : vector<8x128xbf16>, vector<128x256xbf16>, vector<8x256xf32> -> vector<8x256xf32>
    %75 = arith.truncf %74 : vector<8x256xf32> to vector<8x256xbf16>
    %c1_40 = arith.constant 1 : index
    %c0_41 = arith.constant 0 : index
    %c0_42 = arith.constant 0 : index
    %76 = vector.load %arg6[%c1_40, %c0_41, %c0_42] : memref<3x8x256xbf16, #tpu.memory_space<vmem>>, vector<1x8x256xbf16>
    %77 = vector.shape_cast %76 : vector<1x8x256xbf16> to vector<8x256xbf16>
    %78 = vector.shape_cast %75 : vector<8x256xbf16> to vector<1x8x256xbf16>
    tpu.vector_store %arg6[%c1_40, %c0_41, %c0_42], %78 {strides = array<i32>} : memref<3x8x256xbf16, #tpu.memory_space<vmem>>, vector<1x8x256xbf16>,
    %c1_43 = arith.constant 1 : index
    %c0_44 = arith.constant 0 : index
    %c0_45 = arith.constant 0 : index
    %79 = vector.load %arg7[%c1_43, %c0_44, %c0_45] : memref<3x8x128xf32, #tpu.memory_space<vmem>>, vector<1x8x128xf32>
    %80 = vector.shape_cast %79 : vector<1x8x128xf32> to vector<8x128xf32>
    %81 = vector.shape_cast %70 : vector<8x128xf32> to vector<1x8x128xf32>
    tpu.vector_store %arg7[%c1_43, %c0_44, %c0_45], %81 {strides = array<i32>} : memref<3x8x128xf32, #tpu.memory_space<vmem>>, vector<1x8x128xf32>,
    %82 = vector.extract_strided_slice %29 {offsets = [0, 256], sizes = [8, 128], strides = [1, 1]} : vector<8x384xbf16> to vector<8x128xbf16>
    %c2_46 = arith.constant 2 : index
    %c256 = arith.constant 256 : index
    %83 = vector.load %arg3[%c2_46, %c256] : memref<3x384xf32, #tpu.memory_space<vmem>>, vector<1x128xf32>
    %c2_47 = arith.constant 2 : index
    %c0_48 = arith.constant 0 : index
    %c0_49 = arith.constant 0 : index
    %84 = vector.load %arg4[%c2_47, %c0_48, %c0_49] : memref<3x128x128xbf16, #tpu.memory_space<vmem>>, vector<1x128x128xbf16>
    %85 = vector.shape_cast %84 : vector<1x128x128xbf16> to vector<128x128xbf16>
    %cst_50 = arith.constant dense<0.000000e+00> : vector<8x128xf32>
    %86 = tpu.matmul %82, %85, %cst_50 {dimension_numbers = #tpu.dot_dimension_numbers<[1], [0], [0], [1], [0, 0, 1, 1], [], []>} : vector<8x128xbf16>, vector<128x128xbf16>, vector<8x128xf32> -> vector<8x128xf32>
    %87 = vector.broadcast %83 : vector<1x128xf32> to vector<8x128xf32>
    %88 = arith.addf %86, %87 : vector<8x128xf32>
    %89 = arith.mulf %88, %88 : vector<8x128xf32>
    %cst_51 = arith.constant dense<0.000000e+00> : vector<8xf32>
    %90 = vector.multi_reduction <add>, %89, %cst_51 [1] : vector<8x128xf32> to vector<8xf32>
    %91 = vector.shape_cast %90 : vector<8xf32> to vector<8x1xf32>
    %cst_52 = arith.constant 1.000000e-24 : f32
    %92 = vector.broadcast %cst_52 : f32 to vector<8x1xf32>
    %93 = arith.maximumf %91, %92 : vector<8x1xf32>
    %94 = math.rsqrt %93 : vector<8x1xf32>
    %95 = vector.broadcast %94 : vector<8x1xf32> to vector<8x128xf32>
    %96 = arith.mulf %88, %95 : vector<8x128xf32>
    %97 = arith.truncf %96 : vector<8x128xf32> to vector<8x128xbf16>
    %c2_53 = arith.constant 2 : index
    %c0_54 = arith.constant 0 : index
    %c0_55 = arith.constant 0 : index
    %98 = vector.load %arg5[%c2_53, %c0_54, %c0_55] : memref<3x128x256xbf16, #tpu.memory_space<vmem>>, vector<1x128x256xbf16>
    %99 = vector.shape_cast %98 : vector<1x128x256xbf16> to vector<128x256xbf16>
    %cst_56 = arith.constant dense<0.000000e+00> : vector<8x256xf32>
    %100 = tpu.matmul %97, %99, %cst_56 {dimension_numbers = #tpu.dot_dimension_numbers<[1], [0], [0], [1], [0, 0, 1, 1], [], []>} : vector<8x128xbf16>, vector<128x256xbf16>, vector<8x256xf32> -> vector<8x256xf32>
    %101 = arith.truncf %100 : vector<8x256xf32> to vector<8x256xbf16>
    %c2_57 = arith.constant 2 : index
    %c0_58 = arith.constant 0 : index
    %c0_59 = arith.constant 0 : index
    %102 = vector.load %arg6[%c2_57, %c0_58, %c0_59] : memref<3x8x256xbf16, #tpu.memory_space<vmem>>, vector<1x8x256xbf16>
    %103 = vector.shape_cast %102 : vector<1x8x256xbf16> to vector<8x256xbf16>
    %104 = vector.shape_cast %101 : vector<8x256xbf16> to vector<1x8x256xbf16>
    tpu.vector_store %arg6[%c2_57, %c0_58, %c0_59], %104 {strides = array<i32>} : memref<3x8x256xbf16, #tpu.memory_space<vmem>>, vector<1x8x256xbf16>,
    %c2_60 = arith.constant 2 : index
    %c0_61 = arith.constant 0 : index
    %c0_62 = arith.constant 0 : index
    %105 = vector.load %arg7[%c2_60, %c0_61, %c0_62] : memref<3x8x128xf32, #tpu.memory_space<vmem>>, vector<1x8x128xf32>
    %106 = vector.shape_cast %105 : vector<1x8x128xf32> to vector<8x128xf32>
    %107 = vector.shape_cast %96 : vector<8x128xf32> to vector<1x8x128xf32>
    tpu.vector_store %arg7[%c2_60, %c0_61, %c0_62], %107 {strides = array<i32>} : memref<3x8x128xf32, #tpu.memory_space<vmem>>, vector<1x8x128xf32>,
    return
  }
  func.func @transform_0(%arg0: i32) -> (i32, i32) {
    %c0_i32 = arith.constant 0 : i32
    %c0_i32_0 = arith.constant 0 : i32
    %c0_i32_1 = arith.constant 0 : i32
    return %c0_i32, %c0_i32_0 : i32, i32
  }
  func.func @transform_1(%arg0: i32) -> (i32, i32) {
    %c0_i32 = arith.constant 0 : i32
    %c0_i32_0 = arith.constant 0 : i32
    %c0_i32_1 = arith.constant 0 : i32
    return %c0_i32, %c0_i32_0 : i32, i32
  }
  func.func @transform_2(%arg0: i32) -> (i32, i32) {
    %c0_i32 = arith.constant 0 : i32
    %c0_i32_0 = arith.constant 0 : i32
    %c0_i32_1 = arith.constant 0 : i32
    return %c0_i32, %c0_i32_0 : i32, i32
  }
  func.func @transform_3(%arg0: i32) -> (i32, i32, i32) {
    %c0_i32 = arith.constant 0 : i32
    %c0_i32_0 = arith.constant 0 : i32
    %c0_i32_1 = arith.constant 0 : i32
    %c0_i32_2 = arith.constant 0 : i32
    return %c0_i32, %c0_i32_0, %c0_i32_1 : i32, i32, i32
  }
  func.func @transform_4(%arg0: i32) -> (i32, i32, i32) {
    %c0_i32 = arith.constant 0 : i32
    %c0_i32_0 = arith.constant 0 : i32
    %c0_i32_1 = arith.constant 0 : i32
    return %c0_i32, %c0_i32_0, %arg0 : i32, i32, i32
  }
  func.func @transform_5(%arg0: i32) -> (i32, i32, i32) {
    %c0_i32 = arith.constant 0 : i32
    %c0_i32_0 = arith.constant 0 : i32
    %c0_i32_1 = arith.constant 0 : i32
    return %c0_i32, %c0_i32_0, %arg0 : i32, i32, i32
  }
  func.func @transform_6(%arg0: i32) -> (i32, i32, i32) {
    %c0_i32 = arith.constant 0 : i32
    %c0_i32_0 = arith.constant 0 : i32
    %c0_i32_1 = arith.constant 0 : i32
    %c0_i32_2 = arith.constant 0 : i32
    return %c0_i32, %c0_i32_0, %c0_i32_1 : i32, i32, i32
  }
}

</mosaic_0001>

<llo_original>
// kernel: tpu_custom_call.1
$region0: #{tpu_custom_call.1}
  #allocation0 [shape = 'u32[]', space=smem, size = 0x4, offset = 0x4, fixed_abs, tag = 'smem constant byte address 0x4 - core index']
  #allocation1 [shape = 'u32[72,128]{1,0:T(1,128)}', space=vmem, size = 0x9000, scoped, tag = 'internal scratch']
  %s0 = inlined_call_operand.hbm [shape: f32[8,32], index: 0, kind: input, shape index: {}]
  %s1 = inlined_call_operand.hbm [shape: bf16[32,384], index: 1, kind: input, shape index: {}]
  %s2 = inlined_call_operand.hbm [shape: f32[3,384], index: 2, kind: input, shape index: {}]
  %s3 = inlined_call_operand.hbm [shape: bf16[3,128,128], index: 3, kind: input, shape index: {}]
  %s4 = inlined_call_operand.hbm [shape: bf16[3,128,512], index: 4, kind: input, shape index: {}]
  %s5 = inlined_call_operand.hbm [shape: bf16[3,8,512], index: 5, kind: output, shape index: {0}]
  %s6 = inlined_call_operand.hbm [shape: f32[3,8,128], index: 6, kind: output, shape index: {1}]
  %7 = xla_tuple %s5, %s6
  %s8 = sld [smem:[#allocation0]]
  $region81: #{tpu_custom_call.1} parent=0
    _
  %s10 = ssub.s32 1, %s8
  %s11 = scalar_select 0, %s10, %s8
  $region1: #{tpu_custom_call.1} parent=0
    #allocation2 [shape = 'u8[4096]{0}', space=vmem, size = 0x1000, scoped, tag = 'input window, operand 0, single buffered']
    #allocation3 [shape = 's32[2]{0}', space=sflag, size = 0x8, scoped, tag = 'scoped memory for tpu_custom_call.1']
    #allocation4 [shape = 's32[2]{0}', space=sflag, size = 0x8, scoped, tag = 'scoped memory for tpu_custom_call.1']
    #allocation5 [shape = 'u8[24576]{0}', space=vmem, size = 0x6000, scoped, tag = 'input window, operand 1, single buffered']
    #allocation6 [shape = 's32[1]{0}', space=sflag, size = 0x4, scoped, tag = 'scoped memory for tpu_custom_call.1']
    #allocation7 [shape = 'u8[6144]{0}', space=vmem, size = 0x1800, scoped, tag = 'input window, operand 2, single buffered']
    #allocation8 [shape = 'u8[98304]{0}', space=vmem, size = 0x18000, scoped, tag = 'input window, operand 3, single buffered']
    #allocation9 [shape = 's32[1]{0}', space=sflag, size = 0x4, scoped, tag = 'scoped memory for tpu_custom_call.1']
    #allocation10 [shape = 'u8[393216]{0}', space=vmem, size = 0x60000, scoped, tag = 'input window, operand 4']
    #allocation11 [shape = 'u8[24576]{0}', space=vmem, size = 0x6000, scoped, tag = 'output window, operand 0']
    #allocation12 [shape = 'u8[12288]{0}', space=vmem, size = 0x3000, scoped, tag = 'output window, operand 1, single buffered']
    #allocation13 [shape = 's32[1]{0}', space=sflag, size = 0x4, scoped, tag = 'scoped memory for tpu_custom_call.1']
    %12 = vsyncpa [#allocation3], 0
    %13 = vsyncpa [#allocation6], 0
    %14 = vsyncpa [#allocation9], 0
    %15 = vsyncpa [#allocation4], 0
    %s16 = scalar_lea.sflag [#allocation4], 1
    %17 = vsyncpa %s16, 0
    %18 = vsyncpa [#allocation13], 0
    loop: start=0, step=1, limit=4
    $region2: #{tpu_custom_call.1} parent=1 // loop_pre_header
      _
    $region3: #{tpu_custom_call.1} parent=1 // loop_header
      %s20 = sphi 0, %s24
      %p21 = scmp.ge.s32.totalorder %s20, 4
      %s28 = sphi 0, %s28
      %s30 = sphi 0, %s28
      %s31 = sphi 0, %s30
      %s45 = sphi 0, %s31
      %s49 = sphi 0, %s49
      %s51 = sphi 0, %s49
      %s52 = sphi 0, %s51
      %s66 = sphi 0, %s52
      %s70 = sphi 0, %s70
      %s72 = sphi 0, %s70
      %s73 = sphi 0, %s72
      %s87 = sphi 0, %s73
      %s91 = sphi 0, %s91
      %s93 = sphi 0, %s91
      %s94 = sphi 0, %s93
      %s108 = sphi 0, %s94
      %s114 = sphi 0, %s116
      %s117 = sphi 0, %s114
      %s118 = sphi 0, %s117
      %s134 = sphi 0, %s118
      %s140 = sphi 0, %s142
      %s143 = sphi 0, %s140
      %s144 = sphi 0, %s143
      %s160 = sphi 0, %s144
      %s164 = sphi 0, %s164
      %s166 = sphi 0, %s164
      %s167 = sphi 0, %s166
      %s181 = sphi 0, %s167
    $region4: #{tpu_custom_call.1} parent=1 // loop_header_branch
      %23 = sbr.rel (%p21) target = $region8
    $region5: #{tpu_custom_call.1} parent=1 // loop_body
      %s25 = ssub.s32 %s20, 1
      %s26 = ssub.s32 %s20, 2
      %s27 = sadd.s32 %s20, 1
      %s29 = sadd.s32 %s28, 1
      %p32 = scmp.eq.s32.totalorder %s20, 1
      %p33 = scmp.ne.s32.totalorder %s28, %s30
      %p34 = scmp.eq.s32.totalorder %s20, 0
      %p35 = por %p33, %p34
      %p36 = scmp.ne.s32.totalorder %s28, %s30
      %p37 = scmp.eq.s32.totalorder %s25, 1
      %p38 = por %p36, %p37
      %p39 = scmp.ne.s32.totalorder %s30, %s31
      %p40 = scmp.eq.s32.totalorder %s25, 0
      %p41 = por %p39, %p40
      %p42 = scmp.ne.s32.totalorder %s30, %s31
      %p43 = scmp.eq.s32.totalorder %s26, 1
      %p44 = por %p42, %p43
      %p46 = scmp.ne.s32.totalorder %s31, %s45
      %p47 = scmp.eq.s32.totalorder %s26, 0
      %p48 = por %p46, %p47
      %s50 = sadd.s32 %s49, 1
      %p53 = scmp.eq.s32.totalorder %s20, 1
      %p54 = scmp.ne.s32.totalorder %s49, %s51
      %p55 = scmp.eq.s32.totalorder %s20, 0
      %p56 = por %p54, %p55
      %p57 = scmp.ne.s32.totalorder %s49, %s51
      %p58 = scmp.eq.s32.totalorder %s25, 1
      %p59 = por %p57, %p58
      %p60 = scmp.ne.s32.totalorder %s51, %s52
      %p61 = scmp.eq.s32.totalorder %s25, 0
      %p62 = por %p60, %p61
      %p63 = scmp.ne.s32.totalorder %s51, %s52
      %p64 = scmp.eq.s32.totalorder %s26, 1
      %p65 = por %p63, %p64
      %p67 = scmp.ne.s32.totalorder %s52, %s66
      %p68 = scmp.eq.s32.totalorder %s26, 0
      %p69 = por %p67, %p68
      %s71 = sadd.s32 %s70, 1
      %p74 = scmp.eq.s32.totalorder %s20, 1
      %p75 = scmp.ne.s32.totalorder %s70, %s72
      %p76 = scmp.eq.s32.totalorder %s20, 0
      %p77 = por %p75, %p76
      %p78 = scmp.ne.s32.totalorder %s70, %s72
      %p79 = scmp.eq.s32.totalorder %s25, 1
      %p80 = por %p78, %p79
      %p81 = scmp.ne.s32.totalorder %s72, %s73
      %p82 = scmp.eq.s32.totalorder %s25, 0
      %p83 = por %p81, %p82
      %p84 = scmp.ne.s32.totalorder %s72, %s73
      %p85 = scmp.eq.s32.totalorder %s26, 1
      %p86 = por %p84, %p85
      %p88 = scmp.ne.s32.totalorder %s73, %s87
      %p89 = scmp.eq.s32.totalorder %s26, 0
      %p90 = por %p88, %p89
      %s92 = sadd.s32 %s91, 1
      %p95 = scmp.eq.s32.totalorder %s20, 1
      %p96 = scmp.ne.s32.totalorder %s91, %s93
      %p97 = scmp.eq.s32.totalorder %s20, 0
      %p98 = por %p96, %p97
      %p99 = scmp.ne.s32.totalorder %s91, %s93
      %p100 = scmp.eq.s32.totalorder %s25, 1
      %p101 = por %p99, %p100
      %p102 = scmp.ne.s32.totalorder %s93, %s94
      %p103 = scmp.eq.s32.totalorder %s25, 0
      %p104 = por %p102, %p103
      %p105 = scmp.ne.s32.totalorder %s93, %s94
      %p106 = scmp.eq.s32.totalorder %s26, 1
      %p107 = por %p105, %p106
      %p109 = scmp.ne.s32.totalorder %s94, %s108
      %p110 = scmp.eq.s32.totalorder %s26, 0
      %p111 = por %p109, %p110
      %s112 = ssub.s32 %s20, %s27
      %p113 = scmp.eq.s32.totalorder %s112, 0
      %s115 = sadd.s32 %s114, 1
      %s116 = scalar_select %p113, %s114, %s115
      %p119 = pneg %p113
      %p120 = scmp.eq.s32.totalorder %s20, 1
      %p121 = por %p119, %p120
      %p122 = scmp.ne.s32.totalorder %s114, %s117
      %p123 = scmp.eq.s32.totalorder %s20, 0
      %p124 = por %p122, %p123
      %p125 = scmp.ne.s32.totalorder %s114, %s117
      %p126 = scmp.eq.s32.totalorder %s25, 1
      %p127 = por %p125, %p126
      %p128 = scmp.ne.s32.totalorder %s117, %s118
      %p129 = scmp.eq.s32.totalorder %s25, 0
      %p130 = por %p128, %p129
      %p131 = scmp.ne.s32.totalorder %s117, %s118
      %p132 = scmp.eq.s32.totalorder %s26, 1
      %p133 = por %p131, %p132
      %p135 = scmp.ne.s32.totalorder %s118, %s134
      %p136 = scmp.eq.s32.totalorder %s26, 0
      %p137 = por %p135, %p136
      %s138 = ssub.s32 %s20, %s27
      %p139 = scmp.eq.s32.totalorder %s138, 0
      %s141 = sadd.s32 %s140, 1
      %s142 = scalar_select %p139, %s140, %s141
      %p145 = pneg %p139
      %p146 = scmp.eq.s32.totalorder %s20, 1
      %p147 = por %p145, %p146
      %p148 = scmp.ne.s32.totalorder %s140, %s143
      %p149 = scmp.eq.s32.totalorder %s20, 0
      %p150 = por %p148, %p149
      %p151 = scmp.ne.s32.totalorder %s140, %s143
      %p152 = scmp.eq.s32.totalorder %s25, 1
      %p153 = por %p151, %p152
      %p154 = scmp.ne.s32.totalorder %s143, %s144
      %p155 = scmp.eq.s32.totalorder %s25, 0
      %p156 = por %p154, %p155
      %p157 = scmp.ne.s32.totalorder %s143, %s144
      %p158 = scmp.eq.s32.totalorder %s26, 1
      %p159 = por %p157, %p158
      %p161 = scmp.ne.s32.totalorder %s144, %s160
      %p162 = scmp.eq.s32.totalorder %s26, 0
      %p163 = por %p161, %p162
      %s165 = sadd.s32 %s164, 1
      %p168 = scmp.eq.s32.totalorder %s20, 1
      %p169 = scmp.ne.s32.totalorder %s164, %s166
      %p170 = scmp.eq.s32.totalorder %s20, 0
      %p171 = por %p169, %p170
      %p172 = scmp.ne.s32.totalorder %s164, %s166
      %p173 = scmp.eq.s32.totalorder %s25, 1
      %p174 = por %p172, %p173
      %p175 = scmp.ne.s32.totalorder %s166, %s167
      %p176 = scmp.eq.s32.totalorder %s25, 0
      %p177 = por %p175, %p176
      %p178 = scmp.ne.s32.totalorder %s166, %s167
      %p179 = scmp.eq.s32.totalorder %s26, 1
      %p180 = por %p178, %p179
      %p182 = scmp.ne.s32.totalorder %s167, %s181
      %p183 = scmp.eq.s32.totalorder %s26, 0
      %p184 = por %p182, %p183
      %p185 = scmp.le.s32.totalorder 1, %s20
      %p186 = scmp.lt.s32.totalorder %s20, 3
      %p187 = pnand %p185, %p186
      %p188 = pneg %p187
      // Predicated region
      $region9: #{tpu_custom_call.1} parent=5 // pred_check
        _
      $region10: #{tpu_custom_call.1} parent=5 // pred_check_branch
        %190 = sbr.rel (%p187) target = $region12
      $region11: #{tpu_custom_call.1} parent=5 // pred_region
        %s191 = ssub.s32 %s20, 1
        // Predicated region
        $region13: #{tpu_custom_call.1} parent=11 // pred_check
          %p192 = pneg %p41
        $region14: #{tpu_custom_call.1} parent=11 // pred_check_branch
          %194 = sbr.rel (%p192) target = $region16
        $region15: #{tpu_custom_call.1} parent=11 // pred_region
          %196 = vsyncadd [#allocation3], 0
          %s198 = sshll.u32 %s0, 4
          %s199 = int_to_ptr.hbm [resolvable:$true] %s198
          %s200 = sshll.u32 [#allocation2], 4
          %s201 = int_to_ptr.vmem [resolvable:$true] %s200
          %203 = dma.hbm_to_vmem [thread:$0]  %s199, 128, %s201, [#allocation3]
        $region16: #{tpu_custom_call.1} parent=11 // pred_fallthru
          _
        // Predicated region
        $region17: #{tpu_custom_call.1} parent=11 // pred_check
          %p204 = pneg %p62
        $region18: #{tpu_custom_call.1} parent=11 // pred_check_branch
          %206 = sbr.rel (%p204) target = $region20
        $region19: #{tpu_custom_call.1} parent=11 // pred_region
          %208 = vsyncadd [#allocation6], 0
          %s209 = sshll.u32 %s1, 4
          %s210 = int_to_ptr.hbm [resolvable:$true] %s209
          %s211 = sshll.u32 [#allocation5], 4
          %s212 = int_to_ptr.vmem [resolvable:$true] %s211
          %217 = dma.hbm_to_vmem [thread:$0]  %s210, 768, %s212, [#allocation6], 192, 192, 12
        $region20: #{tpu_custom_call.1} parent=11 // pred_fallthru
          _
        // Predicated region
        $region21: #{tpu_custom_call.1} parent=11 // pred_check
          %p218 = pneg %p83
        $region22: #{tpu_custom_call.1} parent=11 // pred_check_branch
          %220 = sbr.rel (%p218) target = $region24
        $region23: #{tpu_custom_call.1} parent=11 // pred_region
          %222 = vsyncadd [#allocation6], 0
          %s224 = sshll.u32 %s2, 4
          %s225 = int_to_ptr.hbm [resolvable:$true] %s224
          %s226 = sshll.u32 [#allocation7], 4
          %s227 = int_to_ptr.vmem [resolvable:$true] %s226
          %229 = dma.hbm_to_vmem [thread:$0]  %s225, 192, %s227, [#allocation6]
        $region24: #{tpu_custom_call.1} parent=11 // pred_fallthru
          _
        // Predicated region
        $region25: #{tpu_custom_call.1} parent=11 // pred_check
          %p230 = pneg %p104
        $region26: #{tpu_custom_call.1} parent=11 // pred_check_branch
          %232 = sbr.rel (%p230) target = $region28
        $region27: #{tpu_custom_call.1} parent=11 // pred_region
          %234 = vsyncadd [#allocation9], 0
          %s235 = sshll.u32 %s3, 4
          %s236 = int_to_ptr.hbm [resolvable:$true] %s235
          %s237 = sshll.u32 [#allocation8], 4
          %s238 = int_to_ptr.vmem [resolvable:$true] %s237
          %243 = dma.hbm_to_vmem [thread:$0]  %s236, 3072, %s238, [#allocation9], 64, 64, 4
        $region28: #{tpu_custom_call.1} parent=11 // pred_fallthru
          _
      $region12: #{tpu_custom_call.1} parent=5 // pred_fallthru
        _
      %p244 = scmp.lt.s32.totalorder %s20, 2
      // Predicated region
      $region29: #{tpu_custom_call.1} parent=5 // pred_check
        %p245 = pneg %p244
      $region30: #{tpu_custom_call.1} parent=5 // pred_check_branch
        %247 = sbr.rel (%p245) target = $region32
      $region31: #{tpu_custom_call.1} parent=5 // pred_region
        // Predicated region
        $region33: #{tpu_custom_call.1} parent=31 // pred_check
          %p248 = pneg %p124
        $region34: #{tpu_custom_call.1} parent=31 // pred_check_branch
          %250 = sbr.rel (%p248) target = $region36
        $region35: #{tpu_custom_call.1} parent=31 // pred_region
          %s251 = sand.u32 %s20, 1
          %s252 = scalar_lea.sflag [#allocation3], %s251
          %s253 = sand.u32 %s114, 1
          %s254 = smul.addr %s253, 384
          %s255 = scalar_lea.vmem [#allocation10], %s254
          %s256 = smul.u32 2, %s20
          %258 = vsyncadd %s252, 0
          %s259 = smul.addr %s256, 4
          %s260 = scalar_lea.hbm %s4, %s259
          %s261 = sshll.u32 %s260, 4
          %s262 = int_to_ptr.hbm [resolvable:$true] %s261
          %s263 = sshll.u32 %s255, 4
          %s264 = int_to_ptr.vmem [resolvable:$true] %s263
          %269 = dma.hbm_to_vmem [thread:$0]  %s262, 6144, %s264, %s252, 256, 128, 8
        $region36: #{tpu_custom_call.1} parent=31 // pred_fallthru
          _
      $region32: #{tpu_custom_call.1} parent=5 // pred_fallthru
        _
      %p270 = scmp.le.s32.totalorder 1, %s20
      %p271 = scmp.lt.s32.totalorder %s20, 3
      %p272 = pnand %p270, %p271
      %p273 = pneg %p272
      // Predicated region
      $region37: #{tpu_custom_call.1} parent=5 // pred_check
        _
      $region38: #{tpu_custom_call.1} parent=5 // pred_check_branch
        %275 = sbr.rel (%p272) target = $region40
      $region39: #{tpu_custom_call.1} parent=5 // pred_region
        %s276 = ssub.s32 %s20, 1
        // Predicated region
        $region41: #{tpu_custom_call.1} parent=39 // pred_check
          %p277 = pneg %p41
        $region42: #{tpu_custom_call.1} parent=39 // pred_check_branch
          %279 = sbr.rel (%p277) target = $region44
        $region43: #{tpu_custom_call.1} parent=39 // pred_region
          %281 = dma.done [#allocation3], 128
        $region44: #{tpu_custom_call.1} parent=39 // pred_fallthru
          _
        // Predicated region
        $region45: #{tpu_custom_call.1} parent=39 // pred_check
          %p282 = pneg %p62
        $region46: #{tpu_custom_call.1} parent=39 // pred_check_branch
          %284 = sbr.rel (%p282) target = $region48
        $region47: #{tpu_custom_call.1} parent=39 // pred_region
          %286 = dma.done [#allocation6], 768
        $region48: #{tpu_custom_call.1} parent=39 // pred_fallthru
          _
        // Predicated region
        $region49: #{tpu_custom_call.1} parent=39 // pred_check
          %p287 = pneg %p83
        $region50: #{tpu_custom_call.1} parent=39 // pred_check_branch
          %289 = sbr.rel (%p287) target = $region52
        $region51: #{tpu_custom_call.1} parent=39 // pred_region
          %291 = dma.done [#allocation6], 192
        $region52: #{tpu_custom_call.1} parent=39 // pred_fallthru
          _
        // Predicated region
        $region53: #{tpu_custom_call.1} parent=39 // pred_check
          %p292 = pneg %p104
        $region54: #{tpu_custom_call.1} parent=39 // pred_check_branch
          %294 = sbr.rel (%p292) target = $region56
        $region55: #{tpu_custom_call.1} parent=39 // pred_region
          %296 = dma.done [#allocation9], 3072
        $region56: #{tpu_custom_call.1} parent=39 // pred_fallthru
          _
        %s297 = sand.u32 %s25, 1
        %s298 = scalar_lea.sflag [#allocation3], %s297
        %s299 = sand.u32 %s117, 1
        %s300 = smul.addr %s299, 384
        %s301 = scalar_lea.vmem [#allocation10], %s300
        // Predicated region
        $region57: #{tpu_custom_call.1} parent=39 // pred_check
          %p302 = pneg %p130
        $region58: #{tpu_custom_call.1} parent=39 // pred_check_branch
          %304 = sbr.rel (%p302) target = $region60
        $region59: #{tpu_custom_call.1} parent=39 // pred_region
          %306 = dma.done %s298, 6144
        $region60: #{tpu_custom_call.1} parent=39 // pred_fallthru
          _
        %p307 = pneg %p41
        %p308 = pneg %p38
        %p309 = pneg %p62
        %p310 = pneg %p59
        %p311 = pneg %p83
        %p312 = pneg %p80
        %p313 = pneg %p104
        %p314 = pneg %p101
        %s315 = sand.u32 %s25, 1
        %s316 = scalar_lea.sflag [#allocation3], %s315
        %s317 = sand.u32 %s117, 1
        %s318 = smul.addr %s317, 384
        %s319 = scalar_lea.vmem [#allocation10], %s318
        %p320 = pneg %p130
        %p321 = pneg %p127
        %p322 = pneg %p156
        %p323 = pneg %p153
        %s324 = sand.u32 %s143, 1
        %s325 = scalar_lea.sflag [#allocation4], %s324
        %s326 = sand.u32 %s143, 1
        %s327 = smul.addr %s326, 24
        %s328 = scalar_lea.vmem [#allocation11], %s327
        %p329 = pneg %p177
        %p330 = pneg %p174
        %s331 = smul.u32 2, %s25
        %s332 = smul.u32 2, %s25
        %v334 = vld [vmem:[#allocation2] sm:$0xff]
        %v335 = vpack.c.bf16 %v334, %v334
        %v336 = vld [vmem:[#allocation5] sm:$0xff]
        %v337 = vld [vmem:[#allocation5 + $0x8] sm:$0xf]
        %v338 = vld [vmem:[#allocation5 + $0xc] sm:$0xff]
        %v339 = vld [vmem:[#allocation5 + $0x14] sm:$0xf]
        %v340 = vld [vmem:[#allocation5 + $0x18] sm:$0xff]
        %v341 = vld [vmem:[#allocation5 + $0x20] sm:$0xf]
        %v342 = vld [vmem:[#allocation5 + $0x24] sm:$0xff]
        %v343 = vld [vmem:[#allocation5 + $0x2c] sm:$0xf]
        %v352 = vunpack.c.l.b16 %v336
        %v353 = vunpack.c.h.b16 %v336
        %v354 = vunpack.c.l.b16 %v337
        %v355 = vunpack.c.l.b16 %v338
        %v356 = vunpack.c.h.b16 %v338
        %v357 = vunpack.c.l.b16 %v339
        %v358 = vunpack.c.l.b16 %v340
        %v359 = vunpack.c.h.b16 %v340
        %v360 = vunpack.c.l.b16 %v341
        %v361 = vunpack.c.l.b16 %v342
        %v362 = vunpack.c.h.b16 %v342
        %v363 = vunpack.c.l.b16 %v343
        %v364 = vpack.c.b16 %v355, %v352
        %v365 = vpack.c.b16 %v356, %v353
        %v366 = vpack.c.b16 %v357, %v354
        %v367 = vpack.c.b16 %v361, %v358
        %v368 = vpack.c.b16 %v362, %v359
        %v369 = vpack.c.b16 %v363, %v360
        %vm376 = vcmask 261120
        %v378 = vsel %vm376, %v335, 0
        %380 = vmatpush.bf16.msra.mxu0 0
        %381 = vmatpush.bf16.msra.mxu0 0
        %382 = vmatpush.bf16.msra.mxu0 0
        %383 = vmatpush.bf16.msra.mxu0 0
        %384 = vmatpush.bf16.msra.mxu0 0
        %385 = vmatpush.bf16.msra.mxu0 0
        %386 = vmatpush.bf16.msra.mxu0 %v367
        %387 = vmatpush.bf16.msra.mxu0 %v364
        %388 = vmatmul.bf16.gmra.mxu0 %v378
        %v389 = vpop.f32.mrf.mxu0
        %v390 = vadd.f32 0.0, %v389
        %v391 = vpop.f32.mrf.mxu0
        %392 = vdwg.mxu0
        %393 = vmatpush.bf16.msra.mxu0 0
        %394 = vmatpush.bf16.msra.mxu0 0
        %395 = vmatpush.bf16.msra.mxu0 0
        %396 = vmatpush.bf16.msra.mxu0 0
        %397 = vmatpush.bf16.msra.mxu0 0
        %398 = vmatpush.bf16.msra.mxu0 0
        %399 = vmatpush.bf16.msra.mxu0 %v368
        %400 = vmatpush.bf16.msra.mxu0 %v365
        %401 = vmatmul.bf16.gmra.mxu0 %v378
        %v402 = vpop.f32.mrf.mxu0
        %v403 = vadd.f32 0.0, %v402
        %v404 = vpop.f32.mrf.mxu0
        %405 = vdwg.mxu0
        %406 = vmatpush.bf16.msra.mxu0 0
        %407 = vmatpush.bf16.msra.mxu0 0
        %408 = vmatpush.bf16.msra.mxu0 0
        %409 = vmatpush.bf16.msra.mxu0 0
        %410 = vmatpush.bf16.msra.mxu0 0
        %411 = vmatpush.bf16.msra.mxu0 0
        %412 = vmatpush.bf16.msra.mxu0 %v369
        %413 = vmatpush.bf16.msra.mxu0 %v366
        %414 = vmatmul.bf16.gmra.mxu0 %v378
        %v415 = vpop.f32.mrf.mxu0
        %v416 = vadd.f32 0.0, %v415
        %v417 = vpop.f32.mrf.mxu0
        %418 = vdwg.mxu0
        %v419 = vld [vmem:[#allocation7] ss:$4 sm:$0x7]
        %s420 = scalar_lea.vmem [#allocation7], 1
        %v421 = vld [vmem:[%s420] ss:$4 sm:$0x7]
        %v422 = vrot.slane %v390, 4
        %v423 = vadd.f32 %v390, %v422
        %v424 = vrot.slane %v423, 2
        %v425 = vadd.f32 %v423, %v424
        %v426 = vrot.slane %v425, 1
        %v427 = vadd.f32 %v425, %v426
        %v428 = vrot.slane %v403, 4
        %v429 = vadd.f32 %v403, %v428
        %v430 = vrot.slane %v429, 2
        %v431 = vadd.f32 %v429, %v430
        %v432 = vrot.slane %v431, 1
        %v433 = vadd.f32 %v431, %v432
        %v434 = vrot.slane %v416, 4
        %v435 = vadd.f32 %v416, %v434
        %v436 = vrot.slane %v435, 2
        %v437 = vadd.f32 %v435, %v436
        %v438 = vrot.slane %v437, 1
        %v439 = vadd.f32 %v437, %v438
        %v440 = vmul.f32 %v390, %v390
        %v441 = vmul.f32 %v403, %v403
        %v442 = vmul.f32 %v416, %v416
        %v443 = vrot.slane %v440, 4
        %v444 = vadd.f32 %v440, %v443
        %v445 = vrot.slane %v444, 2
        %v446 = vadd.f32 %v444, %v445
        %v447 = vrot.slane %v446, 1
        %v448 = vadd.f32 %v446, %v447
        %v449 = vrot.slane %v441, 4
        %v450 = vadd.f32 %v441, %v449
        %v451 = vrot.slane %v450, 2
        %v452 = vadd.f32 %v450, %v451
        %v453 = vrot.slane %v452, 1
        %v454 = vadd.f32 %v452, %v453
        %v455 = vrot.slane %v442, 4
        %v456 = vadd.f32 %v442, %v455
        %v457 = vrot.slane %v456, 2
        %v458 = vadd.f32 %v456, %v457
        %v459 = vrot.slane %v458, 1
        %v460 = vadd.f32 %v458, %v459
        %v461 = vmul.f32 %v427, 0.125
        %v462 = vmul.f32 %v433, 0.125
        %v463 = vmul.f32 %v439, 0.125
        %v464 = vmul.f32 %v448, 0.125
        %v465 = vmul.f32 %v454, 0.125
        %v466 = vmul.f32 %v460, 0.125
        %v467 = vmul.f32 %v461, %v461
        %v468 = vmul.f32 %v462, %v462
        %v469 = vmul.f32 %v463, %v463
        %v470 = vsub.f32 %v464, %v467
        %v471 = vsub.f32 %v465, %v468
        %v472 = vsub.f32 %v466, %v469
        %v473 = vadd.f32 %v470, 1e-05
        %v474 = vadd.f32 %v471, 1e-05
        %v475 = vadd.f32 %v472, 1e-05
        %v476 = vrsqrt.pop %v473
        %v477 = vmul.f32 %v476, %v473
        %v478 = vmul.f32 %v477, %v476
        %v479 = vmul.f32 0.5, %v478
        %v480 = vsub.f32 1.5, %v479
        %v481 = vmul.f32 %v476, %v480
        %vm482 = vweird.f32 %v473
        %vm483 = vweird.f32 %v476
        %vm484 = vmor %vm482, %vm483
        %v485 = vsel %vm484, %v476, %v481
        %v486 = vrsqrt.pop %v474
        %v487 = vmul.f32 %v486, %v474
        %v488 = vmul.f32 %v487, %v486
        %v489 = vmul.f32 0.5, %v488
        %v490 = vsub.f32 1.5, %v489
        %v491 = vmul.f32 %v486, %v490
        %vm492 = vweird.f32 %v474
        %vm493 = vweird.f32 %v486
        %vm494 = vmor %vm492, %vm493
        %v495 = vsel %vm494, %v486, %v491
        %v496 = vrsqrt.pop %v475
        %v497 = vmul.f32 %v496, %v475
        %v498 = vmul.f32 %v497, %v496
        %v499 = vmul.f32 0.5, %v498
        %v500 = vsub.f32 1.5, %v499
        %v501 = vmul.f32 %v496, %v500
        %vm502 = vweird.f32 %v475
        %vm503 = vweird.f32 %v496
        %vm504 = vmor %vm502, %vm503
        %v505 = vsel %vm504, %v496, %v501
        %v509 = vrot.slane %v495, 7
        %v510 = vrot.slane %v505, 6
        %vm511 = vcmask 1040384
        %v512 = vsel %vm511, %v485, %v509
        %vm513 = vcmask 1041408
        %v514 = vsel %vm513, %v512, %v510
        %v516 = vmul.f32 %v419, %v514
        %v518 = vperm.slane %v516, 0
        %v519 = vperm.slane %v516, 1
        %v520 = vperm.slane %v516, 2
        %v524 = vmul.f32 %v461, %v518
        %v525 = vmul.f32 %v462, %v519
        %v526 = vmul.f32 %v463, %v520
        %v530 = vrot.slane %v525, 7
        %v531 = vrot.slane %v526, 6
        %v532 = vsel %vm511, %v524, %v530
        %v533 = vsel %vm513, %v532, %v531
        %v535 = vsub.f32 %v421, %v533
        %v536 = vmul.f32 %v390, %v518
        %v537 = vmul.f32 %v403, %v519
        %v538 = vmul.f32 %v416, %v520
        %v540 = vperm.slane %v535, 0
        %v541 = vperm.slane %v535, 1
        %v542 = vperm.slane %v535, 2
        %v546 = vadd.f32 %v536, %v540
        %v547 = vadd.f32 %v537, %v541
        %v548 = vadd.f32 %v538, %v542
        %v549 = vmax.f32 %v546, 0.0
        %v550 = vmax.f32 %v547, 0.0
        %v551 = vmax.f32 %v548, 0.0
        %v552 = vpack.c.bf16 %v550, %v549
        %v553 = vpack.c.bf16 %v551, %v551
        %v554 = vld [vmem:[#allocation7 + $0x2] sm:$0x1]
        %v555 = vld [vmem:[#allocation8] sm:$0xf]
        %v556 = vld [vmem:[#allocation8 + $0x4] sm:$0xf]
        %v557 = vld [vmem:[#allocation8 + $0x8] sm:$0xf]
        %v558 = vld [vmem:[#allocation8 + $0xc] sm:$0xf]
        %v559 = vld [vmem:[#allocation8 + $0x10] sm:$0xf]
        %v560 = vld [vmem:[#allocation8 + $0x14] sm:$0xf]
        %v561 = vld [vmem:[#allocation8 + $0x18] sm:$0xf]
        %v562 = vld [vmem:[#allocation8 + $0x1c] sm:$0xf]
        %v563 = vld [vmem:[#allocation8 + $0x20] sm:$0xf]
        %v564 = vld [vmem:[#allocation8 + $0x24] sm:$0xf]
        %v565 = vld [vmem:[#allocation8 + $0x28] sm:$0xf]
        %v566 = vld [vmem:[#allocation8 + $0x2c] sm:$0xf]
        %v567 = vld [vmem:[#allocation8 + $0x30] sm:$0xf]
        %v568 = vld [vmem:[#allocation8 + $0x34] sm:$0xf]
        %v569 = vld [vmem:[#allocation8 + $0x38] sm:$0xf]
        %v570 = vld [vmem:[#allocation8 + $0x3c] sm:$0xf]
        %v571 = vperm.slane %v554, 0
        %v588 = vunpack.c.l.b16 %v555
        %v589 = vunpack.c.l.b16 %v556
        %v590 = vunpack.c.l.b16 %v557
        %v591 = vunpack.c.l.b16 %v558
        %v592 = vunpack.c.l.b16 %v559
        %v593 = vunpack.c.l.b16 %v560
        %v594 = vunpack.c.l.b16 %v561
        %v595 = vunpack.c.l.b16 %v562
        %v596 = vunpack.c.l.b16 %v563
        %v597 = vunpack.c.l.b16 %v564
        %v598 = vunpack.c.l.b16 %v565
        %v599 = vunpack.c.l.b16 %v566
        %v600 = vunpack.c.l.b16 %v567
        %v601 = vunpack.c.l.b16 %v568
        %v602 = vunpack.c.l.b16 %v569
        %v603 = vunpack.c.l.b16 %v570
        %v604 = vpack.c.b16 %v589, %v588
        %v605 = vpack.c.b16 %v591, %v590
        %v606 = vpack.c.b16 %v593, %v592
        %v607 = vpack.c.b16 %v595, %v594
        %v608 = vpack.c.b16 %v597, %v596
        %v609 = vpack.c.b16 %v599, %v598
        %v610 = vpack.c.b16 %v601, %v600
        %v611 = vpack.c.b16 %v603, %v602
        %620 = vmatpush.bf16.msra.mxu0 %v611
        %621 = vmatpush.bf16.msra.mxu0 %v610
        %622 = vmatpush.bf16.msra.mxu0 %v609
        %623 = vmatpush.bf16.msra.mxu0 %v608
        %624 = vmatpush.bf16.msra.mxu0 %v607
        %625 = vmatpush.bf16.msra.mxu0 %v606
        %626 = vmatpush.bf16.msra.mxu0 %v605
        %627 = vmatpush.bf16.msra.mxu0 %v604
        %628 = vmatmul.bf16.gmra.mxu0 %v552
        %v629 = vpop.f32.mrf.mxu0
        %v630 = vadd.f32 %v571, %v629
        %v631 = vpop.f32.mrf.mxu0
        %632 = vdwg.mxu0
        %v633 = vmul.f32 %v630, %v630
        %634 = vadd.xlane.f32.xlu0 %v633
        %v635 = vpop.xlane.xlu0 %634
        %v636 = vmax.f32 %v635, 1e-24
        %v637 = vrsqrt.pop %v636
        %v638 = vmul.f32 %v637, %v636
        %v639 = vmul.f32 %v638, %v637
        %v640 = vmul.f32 0.5, %v639
        %v641 = vsub.f32 1.5, %v640
        %v642 = vmul.f32 %v637, %v641
        %vm643 = vweird.f32 %v636
        %vm644 = vweird.f32 %v637
        %vm645 = vmor %vm643, %vm644
        %v646 = vsel %vm645, %v637, %v642
        %v647 = vmul.f32 %v630, %v646
        %v648 = vpack.c.bf16 %v647, %v647
        %v649 = vld [vmem:[%s301] sm:$0xff]
        %v650 = vld [vmem:[%s301 + $0x8] sm:$0xff]
        %v651 = vld [vmem:[%s301 + $0x10] sm:$0xff]
        %v652 = vld [vmem:[%s301 + $0x18] sm:$0xff]
        %v653 = vld [vmem:[%s301 + $0x20] sm:$0xff]
        %v654 = vld [vmem:[%s301 + $0x28] sm:$0xff]
        %v655 = vld [vmem:[%s301 + $0x30] sm:$0xff]
        %v656 = vld [vmem:[%s301 + $0x38] sm:$0xff]
        %v657 = vld [vmem:[%s301 + $0x40] sm:$0xff]
        %v658 = vld [vmem:[%s301 + $0x48] sm:$0xff]
        %v659 = vld [vmem:[%s301 + $0x50] sm:$0xff]
        %v660 = vld [vmem:[%s301 + $0x58] sm:$0xff]
        %v661 = vld [vmem:[%s301 + $0x60] sm:$0xff]
        %v662 = vld [vmem:[%s301 + $0x68] sm:$0xff]
        %v663 = vld [vmem:[%s301 + $0x70] sm:$0xff]
        %v664 = vld [vmem:[%s301 + $0x78] sm:$0xff]
        %v681 = vunpack.c.l.b16 %v649
        %v682 = vunpack.c.h.b16 %v649
        %v683 = vunpack.c.l.b16 %v650
        %v684 = vunpack.c.h.b16 %v650
        %v685 = vunpack.c.l.b16 %v651
        %v686 = vunpack.c.h.b16 %v651
        %v687 = vunpack.c.l.b16 %v652
        %v688 = vunpack.c.h.b16 %v652
        %v689 = vunpack.c.l.b16 %v653
        %v690 = vunpack.c.h.b16 %v653
        %v691 = vunpack.c.l.b16 %v654
        %v692 = vunpack.c.h.b16 %v654
        %v693 = vunpack.c.l.b16 %v655
        %v694 = vunpack.c.h.b16 %v655
        %v695 = vunpack.c.l.b16 %v656
        %v696 = vunpack.c.h.b16 %v656
        %v697 = vunpack.c.l.b16 %v657
        %v698 = vunpack.c.h.b16 %v657
        %v699 = vunpack.c.l.b16 %v658
        %v700 = vunpack.c.h.b16 %v658
        %v701 = vunpack.c.l.b16 %v659
        %v702 = vunpack.c.h.b16 %v659
        %v703 = vunpack.c.l.b16 %v660
        %v704 = vunpack.c.h.b16 %v660
        %v705 = vunpack.c.l.b16 %v661
        %v706 = vunpack.c.h.b16 %v661
        %v707 = vunpack.c.l.b16 %v662
        %v708 = vunpack.c.h.b16 %v662
        %v709 = vunpack.c.l.b16 %v663
        %v710 = vunpack.c.h.b16 %v663
        %v711 = vunpack.c.l.b16 %v664
        %v712 = vunpack.c.h.b16 %v664
        %v713 = vpack.c.b16 %v683, %v681
        %v714 = vpack.c.b16 %v684, %v682
        %v715 = vpack.c.b16 %v687, %v685
        %v716 = vpack.c.b16 %v688, %v686
        %v717 = vpack.c.b16 %v691, %v689
        %v718 = vpack.c.b16 %v692, %v690
        %v719 = vpack.c.b16 %v695, %v693
        %v720 = vpack.c.b16 %v696, %v694
        %v721 = vpack.c.b16 %v699, %v697
        %v722 = vpack.c.b16 %v700, %v698
        %v723 = vpack.c.b16 %v703, %v701
        %v724 = vpack.c.b16 %v704, %v702
        %v725 = vpack.c.b16 %v707, %v705
        %v726 = vpack.c.b16 %v708, %v706
        %v727 = vpack.c.b16 %v711, %v709
        %v728 = vpack.c.b16 %v712, %v710
        %745 = vmatpush.bf16.msra.mxu0 %v727
        %746 = vmatpush.bf16.msra.mxu0 %v725
        %747 = vmatpush.bf16.msra.mxu0 %v723
        %748 = vmatpush.bf16.msra.mxu0 %v721
        %749 = vmatpush.bf16.msra.mxu0 %v719
        %750 = vmatpush.bf16.msra.mxu0 %v717
        %751 = vmatpush.bf16.msra.mxu0 %v715
        %752 = vmatpush.bf16.msra.mxu0 %v713
        %753 = vmatmul.bf16.gmra.mxu0 %v648
        %v754 = vpop.f32.mrf.mxu0
        %v755 = vadd.f32 0.0, %v754
        %v756 = vpop.f32.mrf.mxu0
        %757 = vdwg.mxu0
        %758 = vmatpush.bf16.msra.mxu0 %v728
        %759 = vmatpush.bf16.msra.mxu0 %v726
        %760 = vmatpush.bf16.msra.mxu0 %v724
        %761 = vmatpush.bf16.msra.mxu0 %v722
        %762 = vmatpush.bf16.msra.mxu0 %v720
        %763 = vmatpush.bf16.msra.mxu0 %v718
        %764 = vmatpush.bf16.msra.mxu0 %v716
        %765 = vmatpush.bf16.msra.mxu0 %v714
        %766 = vmatmul.bf16.gmra.mxu0 %v648
        %v767 = vpop.f32.mrf.mxu0
        %v768 = vadd.f32 0.0, %v767
        %v769 = vpop.f32.mrf.mxu0
        %770 = vdwg.mxu0
        %v771 = vpack.c.bf16 %v768, %v755
        %772 = vst [vmem:[%s328] sm:$0xff] %v771
        %773 = vst [vmem:[#allocation12] sm:$0xff] %v647
        %v774 = vld [vmem:[#allocation7 + $0x6] sm:$0x1]
        %s775 = scalar_lea.vmem [#allocation8], 64
        %v776 = vld [vmem:[%s775] sm:$0xf]
        %v777 = vld [vmem:[%s775 + $0x4] sm:$0xf]
        %v778 = vld [vmem:[%s775 + $0x8] sm:$0xf]
        %v779 = vld [vmem:[%s775 + $0xc] sm:$0xf]
        %v780 = vld [vmem:[%s775 + $0x10] sm:$0xf]
        %v781 = vld [vmem:[%s775 + $0x14] sm:$0xf]
        %v782 = vld [vmem:[%s775 + $0x18] sm:$0xf]
        %v783 = vld [vmem:[%s775 + $0x1c] sm:$0xf]
        %v784 = vld [vmem:[%s775 + $0x20] sm:$0xf]
        %v785 = vld [vmem:[%s775 + $0x24] sm:$0xf]
        %v786 = vld [vmem:[%s775 + $0x28] sm:$0xf]
        %v787 = vld [vmem:[%s775 + $0x2c] sm:$0xf]
        %v788 = vld [vmem:[%s775 + $0x30] sm:$0xf]
        %v789 = vld [vmem:[%s775 + $0x34] sm:$0xf]
        %v790 = vld [vmem:[%s775 + $0x38] sm:$0xf]
        %v791 = vld [vmem:[%s775 + $0x3c] sm:$0xf]
        %v792 = vperm.slane %v774, 0
        %v794 = vunpack.c.h.b16 %v552
        %v795 = vpack.c.b16 %v794, %v794
        %v813 = vunpack.c.l.b16 %v776
        %v814 = vunpack.c.l.b16 %v777
        %v815 = vunpack.c.l.b16 %v778
        %v816 = vunpack.c.l.b16 %v779
        %v817 = vunpack.c.l.b16 %v780
        %v818 = vunpack.c.l.b16 %v781
        %v819 = vunpack.c.l.b16 %v782
        %v820 = vunpack.c.l.b16 %v783
        %v821 = vunpack.c.l.b16 %v784
        %v822 = vunpack.c.l.b16 %v785
        %v823 = vunpack.c.l.b16 %v786
        %v824 = vunpack.c.l.b16 %v787
        %v825 = vunpack.c.l.b16 %v788
        %v826 = vunpack.c.l.b16 %v789
        %v827 = vunpack.c.l.b16 %v790
        %v828 = vunpack.c.l.b16 %v791
        %v829 = vpack.c.b16 %v814, %v813
        %v830 = vpack.c.b16 %v816, %v815
        %v831 = vpack.c.b16 %v818, %v817
        %v832 = vpack.c.b16 %v820, %v819
        %v833 = vpack.c.b16 %v822, %v821
        %v834 = vpack.c.b16 %v824, %v823
        %v835 = vpack.c.b16 %v826, %v825
        %v836 = vpack.c.b16 %v828, %v827
        %845 = vmatpush.bf16.msra.mxu0 %v836
        %846 = vmatpush.bf16.msra.mxu0 %v835
        %847 = vmatpush.bf16.msra.mxu0 %v834
        %848 = vmatpush.bf16.msra.mxu0 %v833
        %849 = vmatpush.bf16.msra.mxu0 %v832
        %850 = vmatpush.bf16.msra.mxu0 %v831
        %851 = vmatpush.bf16.msra.mxu0 %v830
        %852 = vmatpush.bf16.msra.mxu0 %v829
        %853 = vmatmul.bf16.gmra.mxu0 %v795
        %v854 = vpop.f32.mrf.mxu0
        %v855 = vadd.f32 %v792, %v854
        %v856 = vpop.f32.mrf.mxu0
        %857 = vdwg.mxu0
        %v858 = vmul.f32 %v855, %v855
        %859 = vadd.xlane.f32.xlu0 %v858
        %v860 = vpop.xlane.xlu0 %859
        %v861 = vmax.f32 %v860, 1e-24
        %v862 = vrsqrt.pop %v861
        %v863 = vmul.f32 %v862, %v861
        %v864 = vmul.f32 %v863, %v862
        %v865 = vmul.f32 0.5, %v864
        %v866 = vsub.f32 1.5, %v865
        %v867 = vmul.f32 %v862, %v866
        %vm868 = vweird.f32 %v861
        %vm869 = vweird.f32 %v862
        %vm870 = vmor %vm868, %vm869
        %v871 = vsel %vm870, %v862, %v867
        %v872 = vmul.f32 %v855, %v871
        %v873 = vpack.c.bf16 %v872, %v872
        %s874 = scalar_lea.vmem %s301, 128 [#allocation10]
        %v875 = vld [vmem:[%s874] sm:$0xff]
        %v876 = vld [vmem:[%s874 + $0x8] sm:$0xff]
        %v877 = vld [vmem:[%s874 + $0x10] sm:$0xff]
        %v878 = vld [vmem:[%s874 + $0x18] sm:$0xff]
        %v879 = vld [vmem:[%s874 + $0x20] sm:$0xff]
        %v880 = vld [vmem:[%s874 + $0x28] sm:$0xff]
        %v881 = vld [vmem:[%s874 + $0x30] sm:$0xff]
        %v882 = vld [vmem:[%s874 + $0x38] sm:$0xff]
        %v883 = vld [vmem:[%s874 + $0x40] sm:$0xff]
        %v884 = vld [vmem:[%s874 + $0x48] sm:$0xff]
        %v885 = vld [vmem:[%s874 + $0x50] sm:$0xff]
        %v886 = vld [vmem:[%s874 + $0x58] sm:$0xff]
        %v887 = vld [vmem:[%s874 + $0x60] sm:$0xff]
        %v888 = vld [vmem:[%s874 + $0x68] sm:$0xff]
        %v889 = vld [vmem:[%s874 + $0x70] sm:$0xff]
        %v890 = vld [vmem:[%s874 + $0x78] sm:$0xff]
        %v907 = vunpack.c.l.b16 %v875
        %v908 = vunpack.c.h.b16 %v875
        %v909 = vunpack.c.l.b16 %v876
        %v910 = vunpack.c.h.b16 %v876
        %v911 = vunpack.c.l.b16 %v877
        %v912 = vunpack.c.h.b16 %v877
        %v913 = vunpack.c.l.b16 %v878
        %v914 = vunpack.c.h.b16 %v878
        %v915 = vunpack.c.l.b16 %v879
        %v916 = vunpack.c.h.b16 %v879
        %v917 = vunpack.c.l.b16 %v880
        %v918 = vunpack.c.h.b16 %v880
        %v919 = vunpack.c.l.b16 %v881
        %v920 = vunpack.c.h.b16 %v881
        %v921 = vunpack.c.l.b16 %v882
        %v922 = vunpack.c.h.b16 %v882
        %v923 = vunpack.c.l.b16 %v883
        %v924 = vunpack.c.h.b16 %v883
        %v925 = vunpack.c.l.b16 %v884
        %v926 = vunpack.c.h.b16 %v884
        %v927 = vunpack.c.l.b16 %v885
        %v928 = vunpack.c.h.b16 %v885
        %v929 = vunpack.c.l.b16 %v886
        %v930 = vunpack.c.h.b16 %v886
        %v931 = vunpack.c.l.b16 %v887
        %v932 = vunpack.c.h.b16 %v887
        %v933 = vunpack.c.l.b16 %v888
        %v934 = vunpack.c.h.b16 %v888
        %v935 = vunpack.c.l.b16 %v889
        %v936 = vunpack.c.h.b16 %v889
        %v937 = vunpack.c.l.b16 %v890
        %v938 = vunpack.c.h.b16 %v890
        %v939 = vpack.c.b16 %v909, %v907
        %v940 = vpack.c.b16 %v910, %v908
        %v941 = vpack.c.b16 %v913, %v911
        %v942 = vpack.c.b16 %v914, %v912
        %v943 = vpack.c.b16 %v917, %v915
        %v944 = vpack.c.b16 %v918, %v916
        %v945 = vpack.c.b16 %v921, %v919
        %v946 = vpack.c.b16 %v922, %v920
        %v947 = vpack.c.b16 %v925, %v923
        %v948 = vpack.c.b16 %v926, %v924
        %v949 = vpack.c.b16 %v929, %v927
        %v950 = vpack.c.b16 %v930, %v928
        %v951 = vpack.c.b16 %v933, %v931
        %v952 = vpack.c.b16 %v934, %v932
        %v953 = vpack.c.b16 %v937, %v935
        %v954 = vpack.c.b16 %v938, %v936
        %971 = vmatpush.bf16.msra.mxu0 %v953
        %972 = vmatpush.bf16.msra.mxu0 %v951
        %973 = vmatpush.bf16.msra.mxu0 %v949
        %974 = vmatpush.bf16.msra.mxu0 %v947
        %975 = vmatpush.bf16.msra.mxu0 %v945
        %976 = vmatpush.bf16.msra.mxu0 %v943
        %977 = vmatpush.bf16.msra.mxu0 %v941
        %978 = vmatpush.bf16.msra.mxu0 %v939
        %979 = vmatmul.bf16.gmra.mxu0 %v873
        %v980 = vpop.f32.mrf.mxu0
        %v981 = vadd.f32 0.0, %v980
        %v982 = vpop.f32.mrf.mxu0
        %983 = vdwg.mxu0
        %984 = vmatpush.bf16.msra.mxu0 %v954
        %985 = vmatpush.bf16.msra.mxu0 %v952
        %986 = vmatpush.bf16.msra.mxu0 %v950
        %987 = vmatpush.bf16.msra.mxu0 %v948
        %988 = vmatpush.bf16.msra.mxu0 %v946
        %989 = vmatpush.bf16.msra.mxu0 %v944
        %990 = vmatpush.bf16.msra.mxu0 %v942
        %991 = vmatpush.bf16.msra.mxu0 %v940
        %992 = vmatmul.bf16.gmra.mxu0 %v873
        %v993 = vpop.f32.mrf.mxu0
        %v994 = vadd.f32 0.0, %v993
        %v995 = vpop.f32.mrf.mxu0
        %996 = vdwg.mxu0
        %v997 = vpack.c.bf16 %v994, %v981
        %s998 = scalar_lea.vmem %s328, 8 [#allocation11]
        %999 = vst [vmem:[%s998] sm:$0xff] %v997
        %s1000 = scalar_lea.vmem [#allocation12], 8
        %1001 = vst [vmem:[%s1000] sm:$0xff] %v872
        %v1002 = vld [vmem:[#allocation7 + $0xa] sm:$0x1]
        %s1003 = scalar_lea.vmem [#allocation8], 128
        %v1004 = vld [vmem:[%s1003] sm:$0xf]
        %v1005 = vld [vmem:[%s1003 + $0x4] sm:$0xf]
        %v1006 = vld [vmem:[%s1003 + $0x8] sm:$0xf]
        %v1007 = vld [vmem:[%s1003 + $0xc] sm:$0xf]
        %v1008 = vld [vmem:[%s1003 + $0x10] sm:$0xf]
        %v1009 = vld [vmem:[%s1003 + $0x14] sm:$0xf]
        %v1010 = vld [vmem:[%s1003 + $0x18] sm:$0xf]
        %v1011 = vld [vmem:[%s1003 + $0x1c] sm:$0xf]
        %v1012 = vld [vmem:[%s1003 + $0x20] sm:$0xf]
        %v1013 = vld [vmem:[%s1003 + $0x24] sm:$0xf]
        %v1014 = vld [vmem:[%s1003 + $0x28] sm:$0xf]
        %v1015 = vld [vmem:[%s1003 + $0x2c] sm:$0xf]
        %v1016 = vld [vmem:[%s1003 + $0x30] sm:$0xf]
        %v1017 = vld [vmem:[%s1003 + $0x34] sm:$0xf]
        %v1018 = vld [vmem:[%s1003 + $0x38] sm:$0xf]
        %v1019 = vld [vmem:[%s1003 + $0x3c] sm:$0xf]
        %v1020 = vperm.slane %v1002, 0
        %v1037 = vunpack.c.l.b16 %v1004
        %v1038 = vunpack.c.l.b16 %v1005
        %v1039 = vunpack.c.l.b16 %v1006
        %v1040 = vunpack.c.l.b16 %v1007
        %v1041 = vunpack.c.l.b16 %v1008
        %v1042 = vunpack.c.l.b16 %v1009
        %v1043 = vunpack.c.l.b16 %v1010
        %v1044 = vunpack.c.l.b16 %v1011
        %v1045 = vunpack.c.l.b16 %v1012
        %v1046 = vunpack.c.l.b16 %v1013
        %v1047 = vunpack.c.l.b16 %v1014
        %v1048 = vunpack.c.l.b16 %v1015
        %v1049 = vunpack.c.l.b16 %v1016
        %v1050 = vunpack.c.l.b16 %v1017
        %v1051 = vunpack.c.l.b16 %v1018
        %v1052 = vunpack.c.l.b16 %v1019
        %v1053 = vpack.c.b16 %v1038, %v1037
        %v1054 = vpack.c.b16 %v1040, %v1039
        %v1055 = vpack.c.b16 %v1042, %v1041
        %v1056 = vpack.c.b16 %v1044, %v1043
        %v1057 = vpack.c.b16 %v1046, %v1045
        %v1058 = vpack.c.b16 %v1048, %v1047
        %v1059 = vpack.c.b16 %v1050, %v1049
        %v1060 = vpack.c.b16 %v1052, %v1051
        %1069 = vmatpush.bf16.msra.mxu0 %v1060
        %1070 = vmatpush.bf16.msra.mxu0 %v1059
        %1071 = vmatpush.bf16.msra.mxu0 %v1058
        %1072 = vmatpush.bf16.msra.mxu0 %v1057
        %1073 = vmatpush.bf16.msra.mxu0 %v1056
        %1074 = vmatpush.bf16.msra.mxu0 %v1055
        %1075 = vmatpush.bf16.msra.mxu0 %v1054
        %1076 = vmatpush.bf16.msra.mxu0 %v1053
        %1077 = vmatmul.bf16.gmra.mxu0 %v553
        %v1078 = vpop.f32.mrf.mxu0
        %v1079 = vadd.f32 %v1020, %v1078
        %v1080 = vpop.f32.mrf.mxu0
        %1081 = vdwg.mxu0
        %v1082 = vmul.f32 %v1079, %v1079
        %1083 = vadd.xlane.f32.xlu0 %v1082
        %v1084 = vpop.xlane.xlu0 %1083
        %v1085 = vmax.f32 %v1084, 1e-24
        %v1086 = vrsqrt.pop %v1085
        %v1087 = vmul.f32 %v1086, %v1085
        %v1088 = vmul.f32 %v1087, %v1086
        %v1089 = vmul.f32 0.5, %v1088
        %v1090 = vsub.f32 1.5, %v1089
        %v1091 = vmul.f32 %v1086, %v1090
        %vm1092 = vweird.f32 %v1085
        %vm1093 = vweird.f32 %v1086
        %vm1094 = vmor %vm1092, %vm1093
        %v1095 = vsel %vm1094, %v1086, %v1091
        %v1096 = vmul.f32 %v1079, %v1095
        %v1097 = vpack.c.bf16 %v1096, %v1096
        %s1098 = scalar_lea.vmem %s301, 256 [#allocation10]
        %v1099 = vld [vmem:[%s1098] sm:$0xff]
        %v1100 = vld [vmem:[%s1098 + $0x8] sm:$0xff]
        %v1101 = vld [vmem:[%s1098 + $0x10] sm:$0xff]
        %v1102 = vld [vmem:[%s1098 + $0x18] sm:$0xff]
        %v1103 = vld [vmem:[%s1098 + $0x20] sm:$0xff]
        %v1104 = vld [vmem:[%s1098 + $0x28] sm:$0xff]
        %v1105 = vld [vmem:[%s1098 + $0x30] sm:$0xff]
        %v1106 = vld [vmem:[%s1098 + $0x38] sm:$0xff]
        %v1107 = vld [vmem:[%s1098 + $0x40] sm:$0xff]
        %v1108 = vld [vmem:[%s1098 + $0x48] sm:$0xff]
        %v1109 = vld [vmem:[%s1098 + $0x50] sm:$0xff]
        %v1110 = vld [vmem:[%s1098 + $0x58] sm:$0xff]
        %v1111 = vld [vmem:[%s1098 + $0x60] sm:$0xff]
        %v1112 = vld [vmem:[%s1098 + $0x68] sm:$0xff]
        %v1113 = vld [vmem:[%s1098 + $0x70] sm:$0xff]
        %v1114 = vld [vmem:[%s1098 + $0x78] sm:$0xff]
        %v1131 = vunpack.c.l.b16 %v1099
        %v1132 = vunpack.c.h.b16 %v1099
        %v1133 = vunpack.c.l.b16 %v1100
        %v1134 = vunpack.c.h.b16 %v1100
        %v1135 = vunpack.c.l.b16 %v1101
        %v1136 = vunpack.c.h.b16 %v1101
        %v1137 = vunpack.c.l.b16 %v1102
        %v1138 = vunpack.c.h.b16 %v1102
        %v1139 = vunpack.c.l.b16 %v1103
        %v1140 = vunpack.c.h.b16 %v1103
        %v1141 = vunpack.c.l.b16 %v1104
        %v1142 = vunpack.c.h.b16 %v1104
        %v1143 = vunpack.c.l.b16 %v1105
        %v1144 = vunpack.c.h.b16 %v1105
        %v1145 = vunpack.c.l.b16 %v1106
        %v1146 = vunpack.c.h.b16 %v1106
        %v1147 = vunpack.c.l.b16 %v1107
        %v1148 = vunpack.c.h.b16 %v1107
        %v1149 = vunpack.c.l.b16 %v1108
        %v1150 = vunpack.c.h.b16 %v1108
        %v1151 = vunpack.c.l.b16 %v1109
        %v1152 = vunpack.c.h.b16 %v1109
        %v1153 = vunpack.c.l.b16 %v1110
        %v1154 = vunpack.c.h.b16 %v1110
        %v1155 = vunpack.c.l.b16 %v1111
        %v1156 = vunpack.c.h.b16 %v1111
        %v1157 = vunpack.c.l.b16 %v1112
        %v1158 = vunpack.c.h.b16 %v1112
        %v1159 = vunpack.c.l.b16 %v1113
        %v1160 = vunpack.c.h.b16 %v1113
        %v1161 = vunpack.c.l.b16 %v1114
        %v1162 = vunpack.c.h.b16 %v1114
        %v1163 = vpack.c.b16 %v1133, %v1131
        %v1164 = vpack.c.b16 %v1134, %v1132
        %v1165 = vpack.c.b16 %v1137, %v1135
        %v1166 = vpack.c.b16 %v1138, %v1136
        %v1167 = vpack.c.b16 %v1141, %v1139
        %v1168 = vpack.c.b16 %v1142, %v1140
        %v1169 = vpack.c.b16 %v1145, %v1143
        %v1170 = vpack.c.b16 %v1146, %v1144
        %v1171 = vpack.c.b16 %v1149, %v1147
        %v1172 = vpack.c.b16 %v1150, %v1148
        %v1173 = vpack.c.b16 %v1153, %v1151
        %v1174 = vpack.c.b16 %v1154, %v1152
        %v1175 = vpack.c.b16 %v1157, %v1155
        %v1176 = vpack.c.b16 %v1158, %v1156
        %v1177 = vpack.c.b16 %v1161, %v1159
        %v1178 = vpack.c.b16 %v1162, %v1160
        %1195 = vmatpush.bf16.msra.mxu0 %v1177
        %1196 = vmatpush.bf16.msra.mxu0 %v1175
        %1197 = vmatpush.bf16.msra.mxu0 %v1173
        %1198 = vmatpush.bf16.msra.mxu0 %v1171
        %1199 = vmatpush.bf16.msra.mxu0 %v1169
        %1200 = vmatpush.bf16.msra.mxu0 %v1167
        %1201 = vmatpush.bf16.msra.mxu0 %v1165
        %1202 = vmatpush.bf16.msra.mxu0 %v1163
        %1203 = vmatmul.bf16.gmra.mxu0 %v1097
        %v1204 = vpop.f32.mrf.mxu0
        %v1205 = vadd.f32 0.0, %v1204
        %v1206 = vpop.f32.mrf.mxu0
        %1207 = vdwg.mxu0
        %1208 = vmatpush.bf16.msra.mxu0 %v1178
        %1209 = vmatpush.bf16.msra.mxu0 %v1176
        %1210 = vmatpush.bf16.msra.mxu0 %v1174
        %1211 = vmatpush.bf16.msra.mxu0 %v1172
        %1212 = vmatpush.bf16.msra.mxu0 %v1170
        %1213 = vmatpush.bf16.msra.mxu0 %v1168
        %1214 = vmatpush.bf16.msra.mxu0 %v1166
        %1215 = vmatpush.bf16.msra.mxu0 %v1164
        %1216 = vmatmul.bf16.gmra.mxu0 %v1097
        %v1217 = vpop.f32.mrf.mxu0
        %v1218 = vadd.f32 0.0, %v1217
        %v1219 = vpop.f32.mrf.mxu0
        %1220 = vdwg.mxu0
        %v1221 = vpack.c.bf16 %v1218, %v1205
        %s1222 = scalar_lea.vmem %s328, 16 [#allocation11]
        %1223 = vst [vmem:[%s1222] sm:$0xff] %v1221
        %s1224 = scalar_lea.vmem [#allocation12], 16
        %1225 = vst [vmem:[%s1224] sm:$0xff] %v1096
        %s1226 = sand.u32 %s143, 1
        %s1227 = scalar_lea.sflag [#allocation4], %s1226
        %s1228 = sand.u32 %s143, 1
        %s1229 = smul.addr %s1228, 24
        %s1230 = scalar_lea.vmem [#allocation11], %s1229
        // Predicated region
        $region61: #{tpu_custom_call.1} parent=39 // pred_check
          %p1231 = pneg %p153
        $region62: #{tpu_custom_call.1} parent=39 // pred_check_branch
          %1233 = sbr.rel (%p1231) target = $region64
        $region63: #{tpu_custom_call.1} parent=39 // pred_region
          %s1234 = smul.u32 2, %s25
          %1236 = vsyncadd %s1227, 0
          %s1237 = smul.addr %s1234, 4
          %s1238 = scalar_lea.hbm %s5, %s1237
          %s1239 = sshll.u32 %s1230, 4
          %s1240 = int_to_ptr.vmem [resolvable:$true] %s1239
          %s1241 = sshll.u32 %s1238, 4
          %s1242 = int_to_ptr.hbm [resolvable:$true] %s1241
          %1247 = dma.vmem_to_hbm [thread:$0]  %s1240, 384, %s1242, %s1227, 128, 256, 8
        $region64: #{tpu_custom_call.1} parent=39 // pred_fallthru
          _
        // Predicated region
        $region65: #{tpu_custom_call.1} parent=39 // pred_check
          %p1248 = pneg %p174
        $region66: #{tpu_custom_call.1} parent=39 // pred_check_branch
          %1250 = sbr.rel (%p1248) target = $region68
        $region67: #{tpu_custom_call.1} parent=39 // pred_region
          %1252 = vsyncadd [#allocation13], 0
          %s1253 = sshll.u32 [#allocation12], 4
          %s1254 = int_to_ptr.vmem [resolvable:$true] %s1253
          %s1255 = sshll.u32 %s6, 4
          %s1256 = int_to_ptr.hbm [resolvable:$true] %s1255
          %1261 = dma.vmem_to_hbm [thread:$0]  %s1254, 384, %s1256, [#allocation13], 128, 128, 8
        $region68: #{tpu_custom_call.1} parent=39 // pred_fallthru
          _
        // Predicated region
        $region69: #{tpu_custom_call.1} parent=39 // pred_check
          %p1262 = pneg %p174
        $region70: #{tpu_custom_call.1} parent=39 // pred_check_branch
          %1264 = sbr.rel (%p1262) target = $region72
        $region71: #{tpu_custom_call.1} parent=39 // pred_region
          %1266 = dma.done [#allocation13], 384
        $region72: #{tpu_custom_call.1} parent=39 // pred_fallthru
          _
      $region40: #{tpu_custom_call.1} parent=5 // pred_fallthru
        _
      %p1267 = scmp.le.s32.totalorder 2, %s20
      // Predicated region
      $region73: #{tpu_custom_call.1} parent=5 // pred_check
        %p1268 = pneg %p1267
      $region74: #{tpu_custom_call.1} parent=5 // pred_check_branch
        %1270 = sbr.rel (%p1268) target = $region76
      $region75: #{tpu_custom_call.1} parent=5 // pred_region
        %s1271 = ssub.s32 %s20, 2
        // Predicated region
        $region77: #{tpu_custom_call.1} parent=75 // pred_check
          %p1272 = pneg %p159
        $region78: #{tpu_custom_call.1} parent=75 // pred_check_branch
          %1274 = sbr.rel (%p1272) target = $region80
        $region79: #{tpu_custom_call.1} parent=75 // pred_region
          %s1275 = sand.u32 %s144, 1
          %s1276 = scalar_lea.sflag [#allocation4], %s1275
          %s1277 = sand.u32 %s144, 1
          %s1278 = smul.addr %s1277, 24
          %s1279 = scalar_lea.vmem [#allocation11], %s1278
          %1281 = dma.done %s1276, 384
        $region80: #{tpu_custom_call.1} parent=75 // pred_fallthru
          _
      $region76: #{tpu_custom_call.1} parent=5 // pred_fallthru
        _
    $region6: #{tpu_custom_call.1} parent=1 // loop_footer
      %s24 = sadd.s32 1, %s20
    $region7: #{tpu_custom_call.1} parent=1 // loop_footer_branch
      %19 = sbr.rel target = $region3
    $region8: #{tpu_custom_call.1} parent=1 // loop_exit
      _
    %1282 = vsyncpa [#allocation3], 1
    %s1283 = scalar_lea.sflag [#allocation3], 1
    %1284 = vsyncpa %s1283, 1
    %1285 = vsyncpa [#allocation6], 1
    %1286 = vsyncpa [#allocation9], 1
    %1287 = vsyncpa [#allocation4], 1
    %s1288 = scalar_lea.sflag [#allocation4], 1
    %1289 = vsyncpa %s1288, 1
    %1290 = vsyncpa [#allocation13], 1

</llo_original>
